<compile_context>
chip_gen: v5e
topology: v5e:2x2
jax: 0.10.0
libtpu: 0.0.40
codegen_flags: <defaults>
</compile_context>

<pallas_src>
import functools
import math

import jax
import jax.numpy as jnp
from jax import lax
from jax.experimental import pallas as pl
from jax.experimental.pallas import tpu as pltpu

_EPS = 1e-5
_GELU_C = math.sqrt(2.0 / math.pi)


def _layernorm(h, g, b):
    mean = jnp.mean(h, axis=-1, keepdims=True)
    var = jnp.mean((h - mean) ** 2, axis=-1, keepdims=True)   # unbiased=False
    return (h - mean) * lax.rsqrt(var + _EPS) * g + b


def _pick_batch_block(batch):
    """v7x has 2 TensorCores/chip -> keep a batch-parallel grid axis.
    Single-TC chips (v5e/v6e/other) -> fold the whole batch into one step."""
    try:
        kind = jax.devices()[0].device_kind.lower()
    except Exception:
        kind = ""
    if "v7" in kind or "7x" in kind:
        return 1
    return batch


# ------------------- fused transformer-stack kernel -------------------------

def _gpt2_stack_kernel(x_ref, mask_ref,
                       ln1_g_ref, ln1_b_ref,
                       wqkv_ref, bqkv_ref,
                       wo_ref, bo_ref,
                       ln2_g_ref, ln2_b_ref,
                       w1_ref, b1_ref, w2_ref, b2_ref,
                       o_ref,
                       *, num_heads, head_dim):
    layer = pl.program_id(1)

    # Residual stream lives in the (VMEM-resident) output block across the
    # layer axis; initialise it from the embeddings at the first layer.
    @pl.when(layer == 0)
    def _():
        o_ref[...] = x_ref[...]

    x = o_ref[0]                                        # (R, D) f32
    R, D = x.shape
    mask_bias = mask_ref[...]                           # (R, R) f32, additive

    # ---------------- attention branch ----------------
    h = _layernorm(x, ln1_g_ref[0], ln1_b_ref[0])

    # Fused QKV: one (R, D) @ (D, 3D) bf16 matmul, f32 accumulation.
    qkv = jnp.dot(h.astype(jnp.bfloat16), wqkv_ref[0],
                  preferred_element_type=jnp.float32) + bqkv_ref[0]
    q = qkv[:, :D].astype(jnp.bfloat16)        # 1/sqrt(head_dim) already folded
    k = qkv[:, D:2 * D].astype(jnp.bfloat16)
    v = qkv[:, 2 * D:].astype(jnp.bfloat16)

    # TODO(synk): at realistic head_dim / seq_len, batch the per-head score and
    # PV matmuls over a head dimension instead of 32-lane slices.
    ctx_heads = []
    for hh in range(num_heads):
        sl = slice(hh * head_dim, (hh + 1) * head_dim)
        qh, kh, vh = q[:, sl], k[:, sl], v[:, sl]       # (R, hd) lane slices
        s = lax.dot_general(qh, kh, (((1,), (1,)), ((), ())),
                            preferred_element_type=jnp.float32)   # (R, R)
        s = s + mask_bias
        s = s - jnp.max(s, axis=-1, keepdims=True)
        p = jnp.exp(s)
        p = p * pl.reciprocal(jnp.sum(p, axis=-1, keepdims=True), approx=True)
        # TODO(synk): attention-weight dropout skipped (rate 0 / eval mode).
        ctx_heads.append(jnp.dot(p.astype(jnp.bfloat16), vh,
                                 preferred_element_type=jnp.float32))  # (R, hd)

    # One output projection for all heads (single wide MXU matmul).
    ctx = jnp.concatenate(ctx_heads, axis=-1).astype(jnp.bfloat16)     # (R, D)
    attn_out = jnp.dot(ctx, wo_ref[0],
                       preferred_element_type=jnp.float32) + bo_ref[0]

    x = x + attn_out                                    # residual 1

    # ---------------- feed-forward branch ----------------
    h2 = _layernorm(x, ln2_g_ref[0], ln2_b_ref[0])
    f = jnp.dot(h2.astype(jnp.bfloat16), w1_ref[0],
                preferred_element_type=jnp.float32) + b1_ref[0]
    # GELU (tanh approximation, as in the from-scratch GPT-2 code), f32 math.
    f = 0.5 * f * (1.0 + jnp.tanh(_GELU_C * (f + 0.044715 * f ** 3)))
    ff = jnp.dot(f.astype(jnp.bfloat16), w2_ref[0],
                 preferred_element_type=jnp.float32) + b2_ref[0]

    o_ref[0] = (x + ff).astype(o_ref.dtype)             # residual 2


def gpt2_blocks(x, layers, *, num_heads, batch_block=None):
    B, T, D = x.shape
    NL = len(layers)
    head_dim = D // num_heads
    scale = 1.0 / math.sqrt(head_dim)

    BB = _pick_batch_block(B) if batch_block is None else batch_block
    assert B % BB == 0
    NB = B // BB            # batch grid extent
    R = BB * T              # rows per grid step

    # ---- stacked (NL, ...) weights; QKV fused with scale folded into Wq/bq ----
    wqkv = jnp.stack([jnp.concatenate([lp['wq'] * scale, lp['wk'], lp['wv']],
                                      axis=1) for lp in layers]).astype(jnp.bfloat16)
    bqkv = jnp.stack([jnp.concatenate([lp['bq'] * scale, lp['bk'], lp['bv']],
                                      axis=1) for lp in layers])
    ln1_g = jnp.stack([lp['ln1_g'] for lp in layers])
    ln1_b = jnp.stack([lp['ln1_b'] for lp in layers])
    wo = jnp.stack([lp['wo'] for lp in layers]).astype(jnp.bfloat16)
    bo = jnp.stack([lp['bo'] for lp in layers])
    ln2_g = jnp.stack([lp['ln2_g'] for lp in layers])
    ln2_b = jnp.stack([lp['ln2_b'] for lp in layers])
    w1 = jnp.stack([lp['w1'] for lp in layers]).astype(jnp.bfloat16)
    b1 = jnp.stack([lp['b1'] for lp in layers])
    w2 = jnp.stack([lp['w2'] for lp in layers]).astype(jnp.bfloat16)
    b2 = jnp.stack([lp['b2'] for lp in layers])

    # Block-diagonal (batch) x causal additive mask, built once at trace time.
    r = jnp.arange(R)
    same_seq = (r[:, None] // T) == (r[None, :] // T)
    causal = r[None, :] <= r[:, None]
    mask_bias = jnp.where(same_seq & causal, 0.0, -1e30).astype(jnp.float32)

    xr = x.reshape(NB, R, D)

    def wspec(shape):
        # one layer's slice of a stacked (NL, ...) weight, indexed by grid l
        zeros = (0,) * (len(shape) - 1)
        return pl.BlockSpec((1,) + shape[1:], lambda b, l, z=zeros: (l,) + z)

    in_specs = [
        pl.BlockSpec((1, R, D), lambda b, l: (b, 0, 0)),   # x (embeddings)
        pl.BlockSpec((R, R), lambda b, l: (0, 0)),         # mask bias
        wspec(ln1_g.shape), wspec(ln1_b.shape),
        wspec(wqkv.shape), wspec(bqkv.shape),
        wspec(wo.shape), wspec(bo.shape),
        wspec(ln2_g.shape), wspec(ln2_b.shape),
        wspec(w1.shape), wspec(b1.shape),
        wspec(w2.shape), wspec(b2.shape),
    ]

    kernel = functools.partial(_gpt2_stack_kernel,
                               num_heads=num_heads, head_dim=head_dim)

    out = pl.pallas_call(
        kernel,
        out_shape=jax.ShapeDtypeStruct((NB, R, D), x.dtype),
        grid_spec=pltpu.PrefetchScalarGridSpec(
            num_scalar_prefetch=0,
            grid=(NB, NL),
            in_specs=in_specs,
            out_specs=pl.BlockSpec((1, R, D), lambda b, l: (b, 0, 0)),
        ),
        compiler_params=pltpu.CompilerParams(
            dimension_semantics=("parallel", "arbitrary"),
            vmem_limit_bytes=32 * 1024 * 1024),
    )(xr, mask_bias,
      ln1_g, ln1_b, wqkv, bqkv, wo, bo, ln2_g, ln2_b, w1, b1, w2, b2)

    return out.reshape(B, T, D)


# ------------------------ final LayerNorm + head kernel ----------------------

def _final_norm_head_kernel(x_ref, g_ref, b_ref, wout_ref, o_ref):
    h = _layernorm(x_ref[0], g_ref[...], b_ref[...])
    o_ref[0] = jnp.dot(h.astype(jnp.bfloat16), wout_ref[...],
                       preferred_element_type=jnp.float32).astype(o_ref.dtype)


def final_norm_head(x, g, b, w_out, *, batch_block=None):
    B, T, D = x.shape
    V = w_out.shape[1]

    BB = _pick_batch_block(B) if batch_block is None else batch_block
    assert B % BB == 0
    NB = B // BB
    R = BB * T
    xr = x.reshape(NB, R, D)

    # TODO(synk): at realistic vocab (~50k) tile the V dimension of w_out with
    # a V grid axis instead of loading the full (D, V) weight untiled.
    out = pl.pallas_call(
        _final_norm_head_kernel,
        out_shape=jax.ShapeDtypeStruct((NB, R, V), x.dtype),
        grid_spec=pltpu.PrefetchScalarGridSpec(
            num_scalar_prefetch=0,
            grid=(NB,),
            in_specs=[pl.BlockSpec((1, R, D), lambda bb: (bb, 0, 0)),
                      pl.BlockSpec((1, D), lambda bb: (0, 0)),
                      pl.BlockSpec((1, D), lambda bb: (0, 0)),
                      pl.BlockSpec((D, V), lambda bb: (0, 0))],
            out_specs=pl.BlockSpec((1, R, V), lambda bb: (bb, 0, 0)),
        ),
        compiler_params=pltpu.CompilerParams(
            dimension_semantics=("parallel",),
            vmem_limit_bytes=32 * 1024 * 1024),
    )(xr, g, b, w_out.astype(jnp.bfloat16))
    return out.reshape(B, T, V)


# ----------------------------- full model -------------------------------------

def gpt2_model(input_tokens, params, *, num_heads, batch_block=None):
    T = input_tokens.shape[1]
    # Embedding gather is a data-dependent row lookup; done in plain JAX.
    x = jnp.take(params['tok_emb'], input_tokens, axis=0) + params['pos_emb'][:T]
    # drop_emb / drop_shortcut: identity (drop_rate = 0 / eval mode)
    x = gpt2_blocks(x, params['layers'], num_heads=num_heads,
                    batch_block=batch_block)
    return final_norm_head(x, params['lnf_g'], params['lnf_b'], params['out_w'],
                           batch_block=batch_block)


# --------------------------- pure-JAX reference -------------------------------

def reference_model(input_tokens, params, *, num_heads):
    T = input_tokens.shape[1]
    x = jnp.take(params['tok_emb'], input_tokens, axis=0) + params['pos_emb'][:T]
    B, _, D = x.shape
    hd = D // num_heads

    def ln(h, g, b):
        m = jnp.mean(h, axis=-1, keepdims=True)
        v = jnp.mean((h - m) ** 2, axis=-1, keepdims=True)
        return g * ((h - m) / jnp.sqrt(v + _EPS)) + b

    for p in params['layers']:
        h = ln(x, p['ln1_g'][0], p['ln1_b'][0])
        q = h @ p['wq'] + p['bq'][0]
        k = h @ p['wk'] + p['bk'][0]
        v = h @ p['wv'] + p['bv'][0]
        q = q.reshape(B, T, num_heads, hd).transpose(0, 2, 1, 3)
        k = k.reshape(B, T, num_heads, hd).transpose(0, 2, 1, 3)
        v = v.reshape(B, T, num_heads, hd).transpose(0, 2, 1, 3)
        s = jnp.einsum('bhtd,bhsd->bhts', q, k)
        mask = jnp.triu(jnp.ones((T, T), bool), 1)
        s = jnp.where(mask[None, None], -jnp.inf, s)
        a = jax.nn.softmax(s / jnp.sqrt(jnp.float32(hd)), axis=-1)
        c = jnp.einsum('bhts,bhsd->bhtd', a, v).transpose(0, 2, 1, 3).reshape(B, T, D)
        x = x + (c @ p['wo'] + p['bo'][0])

        h2 = ln(x, p['ln2_g'][0], p['ln2_b'][0])
        f = h2 @ p['w1'] + p['b1'][0]
        f = 0.5 * f * (1.0 + jnp.tanh(_GELU_C * (f + 0.044715 * f ** 3)))
        x = x + (f @ p['w2'] + p['b2'][0])

    xf = ln(x, params['lnf_g'][0], params['lnf_b'][0])
    return xf @ params['out_w']


# --------------------------------- main ---------------------------------------

if __name__ == "__main__":
    # cfg: emb_dim=128, context_length=8, n_heads=4, n_layers=2,
    #      vocab_size=256, drop_rate=0.0, qkv_bias=True
    B, T, D, NH, NL, V = 2, 8, 128, 4, 2, 256
    FF = 4 * D

    keys = list(jax.random.split(jax.random.PRNGKey(0), 6 * NL + 4))

    def nk():
        return keys.pop()

    def w(k, shape):
        return (0.02 * jax.random.normal(k, shape)).astype(jnp.float32)

    layers = []
    for _ in range(NL):
        layers.append({
            'ln1_g': jnp.ones((1, D), jnp.float32),
            'ln1_b': jnp.zeros((1, D), jnp.float32),
            'wq': w(nk(), (D, D)), 'bq': jnp.zeros((1, D), jnp.float32),
            'wk': w(nk(), (D, D)), 'bk': jnp.zeros((1, D), jnp.float32),
            'wv': w(nk(), (D, D)), 'bv': jnp.zeros((1, D), jnp.float32),
            'wo': w(nk(), (D, D)), 'bo': jnp.zeros((1, D), jnp.float32),
            'ln2_g': jnp.ones((1, D), jnp.float32),
            'ln2_b': jnp.zeros((1, D), jnp.float32),
            'w1': w(nk(), (D, FF)), 'b1': jnp.zeros((1, FF), jnp.float32),
            'w2': w(nk(), (FF, D)), 'b2': jnp.zeros((1, D), jnp.float32),
        })

    params = {
        # nn.Embedding default init is N(0, 1)
        'tok_emb': jax.random.normal(nk(), (V, D), jnp.float32),
        'pos_emb': jax.random.normal(nk(), (T, D), jnp.float32),
        'layers': layers,
        'lnf_g': jnp.ones((1, D), jnp.float32),
        'lnf_b': jnp.zeros((1, D), jnp.float32),
        'out_w': w(nk(), (D, V)),
    }

    tokens = jax.random.randint(nk(), (B, T), 0, V, dtype=jnp.int32)

    model = jax.jit(functools.partial(gpt2_model, num_heads=NH))
    logits = jax.block_until_ready(model(tokens, params))

    ref = reference_model(tokens, params, num_heads=NH)

    assert logits.shape == (B, T, V)
    err = float(jnp.max(jnp.abs(logits - ref)))
    # tolerance accounts for bf16 MXU inputs (f32 accumulation) in the kernel
    assert err < 1e-2, err

    print("KERNEL_OK")
</pallas_src>

<mosaic_0001>
module attributes {stable_mosaic.version = 11 : i64} {
  func.func @_gpt2_stack_kernel(%arg0: i32, %arg1: i32, %arg2: memref<1x16x128xf32, #tpu.memory_space<vmem>>, %arg3: memref<16x16xf32, #tpu.memory_space<vmem>>, %arg4: memref<1x1x128xf32, #tpu.memory_space<vmem>>, %arg5: memref<1x1x128xf32, #tpu.memory_space<vmem>>, %arg6: memref<1x128x384xbf16, #tpu.memory_space<vmem>>, %arg7: memref<1x1x384xf32, #tpu.memory_space<vmem>>, %arg8: memref<1x128x128xbf16, #tpu.memory_space<vmem>>, %arg9: memref<1x1x128xf32, #tpu.memory_space<vmem>>, %arg10: memref<1x1x128xf32, #tpu.memory_space<vmem>>, %arg11: memref<1x1x128xf32, #tpu.memory_space<vmem>>, %arg12: memref<1x128x512xbf16, #tpu.memory_space<vmem>>, %arg13: memref<1x1x512xf32, #tpu.memory_space<vmem>>, %arg14: memref<1x512x128xbf16, #tpu.memory_space<vmem>>, %arg15: memref<1x1x128xf32, #tpu.memory_space<vmem>>, %arg16: memref<1x16x128xf32, #tpu.memory_space<vmem>>) attributes {dimension_semantics = [#tpu.dimension_semantics<parallel>, #tpu.dimension_semantics<arbitrary>], iteration_bounds = array<i64: 1, 2>, scalar_prefetch = 0 : i64, scratch_operands = 0 : i64, tpu.core_type = #tpu.core_type<tc>, window_params = [{transform_indices = @transform_0, window_bounds = array<i64: 1, 16, 128>}, {pipeline_mode = #tpu.pipeline_mode<synchronous>, transform_indices = @transform_1, window_bounds = array<i64: 16, 16>}, {transform_indices = @transform_2, window_bounds = array<i64: 1, 1, 128>}, {transform_indices = @transform_3, window_bounds = array<i64: 1, 1, 128>}, {transform_indices = @transform_4, window_bounds = array<i64: 1, 128, 384>}, {transform_indices = @transform_5, window_bounds = array<i64: 1, 1, 384>}, {transform_indices = @transform_6, window_bounds = array<i64: 1, 128, 128>}, {transform_indices = @transform_7, window_bounds = array<i64: 1, 1, 128>}, {transform_indices = @transform_8, window_bounds = array<i64: 1, 1, 128>}, {transform_indices = @transform_9, window_bounds = array<i64: 1, 1, 128>}, {transform_indices = @transform_10, window_bounds = array<i64: 1, 128, 512>}, {transform_indices = @transform_11, window_bounds = array<i64: 1, 1, 512>}, {transform_indices = @transform_12, window_bounds = array<i64: 1, 512, 128>}, {transform_indices = @transform_13, window_bounds = array<i64: 1, 1, 128>}, {transform_indices = @transform_14, window_bounds = array<i64: 1, 16, 128>}]} {
    %c0_i32 = arith.constant 0 : i32
    %0 = arith.cmpi eq, %arg1, %c0_i32 : i32
    %1 = arith.extui %0 : i1 to i32
    %c0_i32_0 = arith.constant 0 : i32
    %2 = arith.cmpi ne, %1, %c0_i32_0 : i32
    scf.if %2 {
      %c0_77 = arith.constant 0 : index
      %c0_78 = arith.constant 0 : index
      %c0_79 = arith.constant 0 : index
      %183 = vector.load %arg2[%c0_77, %c0_78, %c0_79] : memref<1x16x128xf32, #tpu.memory_space<vmem>>, vector<1x16x128xf32>
      %c0_80 = arith.constant 0 : index
      %c0_81 = arith.constant 0 : index
      %c0_82 = arith.constant 0 : index
      %184 = vector.load %arg16[%c0_80, %c0_81, %c0_82] : memref<1x16x128xf32, #tpu.memory_space<vmem>>, vector<1x16x128xf32>
      tpu.vector_store %arg16[%c0_80, %c0_81, %c0_82], %183 {strides = array<i32>} : memref<1x16x128xf32, #tpu.memory_space<vmem>>, vector<1x16x128xf32>,
    } else {
    }
    %c0 = arith.constant 0 : index
    %c0_1 = arith.constant 0 : index
    %c0_2 = arith.constant 0 : index
    %3 = vector.load %arg16[%c0, %c0_1, %c0_2] : memref<1x16x128xf32, #tpu.memory_space<vmem>>, vector<1x16x128xf32>
    %4 = vector.shape_cast %3 : vector<1x16x128xf32> to vector<16x128xf32>
    %c0_3 = arith.constant 0 : index
    %c0_4 = arith.constant 0 : index
    %5 = vector.load %arg3[%c0_3, %c0_4] : memref<16x16xf32, #tpu.memory_space<vmem>>, vector<16x16xf32>
    %c0_5 = arith.constant 0 : index
    %c0_6 = arith.constant 0 : index
    %c0_7 = arith.constant 0 : index
    %6 = vector.load %arg4[%c0_5, %c0_6, %c0_7] : memref<1x1x128xf32, #tpu.memory_space<vmem>>, vector<1x1x128xf32>
    %7 = vector.shape_cast %6 : vector<1x1x128xf32> to vector<1x128xf32>
    %c0_8 = arith.constant 0 : index
    %c0_9 = arith.constant 0 : index
    %c0_10 = arith.constant 0 : index
    %8 = vector.load %arg5[%c0_8, %c0_9, %c0_10] : memref<1x1x128xf32, #tpu.memory_space<vmem>>, vector<1x1x128xf32>
    %9 = vector.shape_cast %8 : vector<1x1x128xf32> to vector<1x128xf32>
    %cst = arith.constant dense<0.000000e+00> : vector<16xf32>
    %10 = vector.multi_reduction <add>, %4, %cst [1] : vector<16x128xf32> to vector<16xf32>
    %11 = vector.shape_cast %10 : vector<16xf32> to vector<16x1xf32>
    %cst_11 = arith.constant 1.280000e+02 : f32
    %12 = vector.broadcast %cst_11 : f32 to vector<16x1xf32>
    %13 = arith.divf %11, %12 : vector<16x1xf32>
    %14 = vector.broadcast %13 : vector<16x1xf32> to vector<16x128xf32>
    %15 = arith.subf %4, %14 : vector<16x128xf32>
    %16 = arith.mulf %15, %15 : vector<16x128xf32>
    %cst_12 = arith.constant dense<0.000000e+00> : vector<16xf32>
    %17 = vector.multi_reduction <add>, %16, %cst_12 [1] : vector<16x128xf32> to vector<16xf32>
    %18 = vector.shape_cast %17 : vector<16xf32> to vector<16x1xf32>
    %cst_13 = arith.constant 1.280000e+02 : f32
    %19 = vector.broadcast %cst_13 : f32 to vector<16x1xf32>
    %20 = arith.divf %18, %19 : vector<16x1xf32>
    %21 = vector.broadcast %13 : vector<16x1xf32> to vector<16x128xf32>
    %22 = arith.subf %4, %21 : vector<16x128xf32>
    %cst_14 = arith.constant 9.99999974E-6 : f32
    %23 = vector.broadcast %cst_14 : f32 to vector<16x1xf32>
    %24 = arith.addf %20, %23 : vector<16x1xf32>
    %25 = math.rsqrt %24 : vector<16x1xf32>
    %26 = vector.broadcast %25 : vector<16x1xf32> to vector<16x128xf32>
    %27 = arith.mulf %22, %26 : vector<16x128xf32>
    %28 = vector.broadcast %7 : vector<1x128xf32> to vector<16x128xf32>
    %29 = arith.mulf %27, %28 : vector<16x128xf32>
    %30 = vector.broadcast %9 : vector<1x128xf32> to vector<16x128xf32>
    %31 = arith.addf %29, %30 : vector<16x128xf32>
    %32 = arith.truncf %31 : vector<16x128xf32> to vector<16x128xbf16>
    %c0_15 = arith.constant 0 : index
    %c0_16 = arith.constant 0 : index
    %c0_17 = arith.constant 0 : index
    %33 = vector.load %arg6[%c0_15, %c0_16, %c0_17] : memref<1x128x384xbf16, #tpu.memory_space<vmem>>, vector<1x128x384xbf16>
    %34 = vector.shape_cast %33 : vector<1x128x384xbf16> to vector<128x384xbf16>
    %cst_18 = arith.constant dense<0.000000e+00> : vector<16x384xf32>
    %35 = tpu.matmul %32, %34, %cst_18 {dimension_numbers = #tpu.dot_dimension_numbers<[1], [0], [0], [1], [0, 0, 1, 1], [], []>} : vector<16x128xbf16>, vector<128x384xbf16>, vector<16x384xf32> -> vector<16x384xf32>
    %c0_19 = arith.constant 0 : index
    %c0_20 = arith.constant 0 : index
    %c0_21 = arith.constant 0 : index
    %36 = vector.load %arg7[%c0_19, %c0_20, %c0_21] : memref<1x1x384xf32, #tpu.memory_space<vmem>>, vector<1x1x384xf32>
    %37 = vector.shape_cast %36 : vector<1x1x384xf32> to vector<1x384xf32>
    %38 = vector.broadcast %37 : vector<1x384xf32> to vector<16x384xf32>
    %39 = arith.addf %35, %38 : vector<16x384xf32>
    %40 = vector.extract_strided_slice %39 {offsets = [0, 0], sizes = [16, 128], strides = [1, 1]} : vector<16x384xf32> to vector<16x128xf32>
    %41 = arith.truncf %40 : vector<16x128xf32> to vector<16x128xbf16>
    %42 = vector.extract_strided_slice %39 {offsets = [0, 128], sizes = [16, 128], strides = [1, 1]} : vector<16x384xf32> to vector<16x128xf32>
    %43 = arith.truncf %42 : vector<16x128xf32> to vector<16x128xbf16>
    %44 = vector.extract_strided_slice %39 {offsets = [0, 256], sizes = [16, 128], strides = [1, 1]} : vector<16x384xf32> to vector<16x128xf32>
    %45 = arith.truncf %44 : vector<16x128xf32> to vector<16x128xbf16>
    %46 = vector.extract_strided_slice %41 {offsets = [0, 0], sizes = [16, 32], strides = [1, 1]} : vector<16x128xbf16> to vector<16x32xbf16>
    %47 = vector.extract_strided_slice %43 {offsets = [0, 0], sizes = [16, 32], strides = [1, 1]} : vector<16x128xbf16> to vector<16x32xbf16>
    %48 = vector.extract_strided_slice %45 {offsets = [0, 0], sizes = [16, 32], strides = [1, 1]} : vector<16x128xbf16> to vector<16x32xbf16>
    %cst_22 = arith.constant dense<0.000000e+00> : vector<16x16xf32>
    %49 = tpu.matmul %46, %47, %cst_22 {dimension_numbers = #tpu.dot_dimension_numbers<[1], [1], [0], [0], [0, 0, 1, 0], [], []>} : vector<16x32xbf16>, vector<16x32xbf16>, vector<16x16xf32> -> vector<16x16xf32>
    %50 = arith.addf %49, %5 : vector<16x16xf32>
    %cst_23 = arith.constant dense<0xFF800000> : vector<16xf32>
    %51 = vector.multi_reduction <maximumf>, %50, %cst_23 [1] : vector<16x16xf32> to vector<16xf32>
    %52 = vector.shape_cast %51 : vector<16xf32> to vector<16x1xf32>
    %53 = vector.broadcast %52 : vector<16x1xf32> to vector<16x16xf32>
    %54 = arith.subf %50, %53 : vector<16x16xf32>
    %55 = math.exp %54 : vector<16x16xf32>
    %cst_24 = arith.constant dense<0.000000e+00> : vector<16xf32>
    %56 = vector.multi_reduction <add>, %55, %cst_24 [1] : vector<16x16xf32> to vector<16xf32>
    %57 = vector.shape_cast %56 : vector<16xf32> to vector<16x1xf32>
    %58 = tpu.reciprocal %57 {approx = true} : vector<16x1xf32> -> vector<16x1xf32>
    %59 = vector.broadcast %58 : vector<16x1xf32> to vector<16x16xf32>
    %60 = arith.mulf %55, %59 : vector<16x16xf32>
    %61 = arith.truncf %60 : vector<16x16xf32> to vector<16x16xbf16>
    %cst_25 = arith.constant dense<0.000000e+00> : vector<16x32xf32>
    %62 = tpu.matmul %61, %48, %cst_25 {dimension_numbers = #tpu.dot_dimension_numbers<[1], [0], [0], [1], [0, 0, 1, 1], [], []>} : vector<16x16xbf16>, vector<16x32xbf16>, vector<16x32xf32> -> vector<16x32xf32>
    %63 = vector.extract_strided_slice %41 {offsets = [0, 32], sizes = [16, 32], strides = [1, 1]} : vector<16x128xbf16> to vector<16x32xbf16>
    %64 = vector.extract_strided_slice %43 {offsets = [0, 32], sizes = [16, 32], strides = [1, 1]} : vector<16x128xbf16> to vector<16x32xbf16>
    %65 = vector.extract_strided_slice %45 {offsets = [0, 32], sizes = [16, 32], strides = [1, 1]} : vector<16x128xbf16> to vector<16x32xbf16>
    %cst_26 = arith.constant dense<0.000000e+00> : vector<16x16xf32>
    %66 = tpu.matmul %63, %64, %cst_26 {dimension_numbers = #tpu.dot_dimension_numbers<[1], [1], [0], [0], [0, 0, 1, 0], [], []>} : vector<16x32xbf16>, vector<16x32xbf16>, vector<16x16xf32> -> vector<16x16xf32>
    %67 = arith.addf %66, %5 : vector<16x16xf32>
    %cst_27 = arith.constant dense<0xFF800000> : vector<16xf32>
    %68 = vector.multi_reduction <maximumf>, %67, %cst_27 [1] : vector<16x16xf32> to vector<16xf32>
    %69 = vector.shape_cast %68 : vector<16xf32> to vector<16x1xf32>
    %70 = vector.broadcast %69 : vector<16x1xf32> to vector<16x16xf32>
    %71 = arith.subf %67, %70 : vector<16x16xf32>
    %72 = math.exp %71 : vector<16x16xf32>
    %cst_28 = arith.constant dense<0.000000e+00> : vector<16xf32>
    %73 = vector.multi_reduction <add>, %72, %cst_28 [1] : vector<16x16xf32> to vector<16xf32>
    %74 = vector.shape_cast %73 : vector<16xf32> to vector<16x1xf32>
    %75 = tpu.reciprocal %74 {approx = true} : vector<16x1xf32> -> vector<16x1xf32>
    %76 = vector.broadcast %75 : vector<16x1xf32> to vector<16x16xf32>
    %77 = arith.mulf %72, %76 : vector<16x16xf32>
    %78 = arith.truncf %77 : vector<16x16xf32> to vector<16x16xbf16>
    %cst_29 = arith.constant dense<0.000000e+00> : vector<16x32xf32>
    %79 = tpu.matmul %78, %65, %cst_29 {dimension_numbers = #tpu.dot_dimension_numbers<[1], [0], [0], [1], [0, 0, 1, 1], [], []>} : vector<16x16xbf16>, vector<16x32xbf16>, vector<16x32xf32> -> vector<16x32xf32>
    %80 = vector.extract_strided_slice %41 {offsets = [0, 64], sizes = [16, 32], strides = [1, 1]} : vector<16x128xbf16> to vector<16x32xbf16>
    %81 = vector.extract_strided_slice %43 {offsets = [0, 64], sizes = [16, 32], strides = [1, 1]} : vector<16x128xbf16> to vector<16x32xbf16>
    %82 = vector.extract_strided_slice %45 {offsets = [0, 64], sizes = [16, 32], strides = [1, 1]} : vector<16x128xbf16> to vector<16x32xbf16>
    %cst_30 = arith.constant dense<0.000000e+00> : vector<16x16xf32>
    %83 = tpu.matmul %80, %81, %cst_30 {dimension_numbers = #tpu.dot_dimension_numbers<[1], [1], [0], [0], [0, 0, 1, 0], [], []>} : vector<16x32xbf16>, vector<16x32xbf16>, vector<16x16xf32> -> vector<16x16xf32>
    %84 = arith.addf %83, %5 : vector<16x16xf32>
    %cst_31 = arith.constant dense<0xFF800000> : vector<16xf32>
    %85 = vector.multi_reduction <maximumf>, %84, %cst_31 [1] : vector<16x16xf32> to vector<16xf32>
    %86 = vector.shape_cast %85 : vector<16xf32> to vector<16x1xf32>
    %87 = vector.broadcast %86 : vector<16x1xf32> to vector<16x16xf32>
    %88 = arith.subf %84, %87 : vector<16x16xf32>
    %89 = math.exp %88 : vector<16x16xf32>
    %cst_32 = arith.constant dense<0.000000e+00> : vector<16xf32>
    %90 = vector.multi_reduction <add>, %89, %cst_32 [1] : vector<16x16xf32> to vector<16xf32>
    %91 = vector.shape_cast %90 : vector<16xf32> to vector<16x1xf32>
    %92 = tpu.reciprocal %91 {approx = true} : vector<16x1xf32> -> vector<16x1xf32>
    %93 = vector.broadcast %92 : vector<16x1xf32> to vector<16x16xf32>
    %94 = arith.mulf %89, %93 : vector<16x16xf32>
    %95 = arith.truncf %94 : vector<16x16xf32> to vector<16x16xbf16>
    %cst_33 = arith.constant dense<0.000000e+00> : vector<16x32xf32>
    %96 = tpu.matmul %95, %82, %cst_33 {dimension_numbers = #tpu.dot_dimension_numbers<[1], [0], [0], [1], [0, 0, 1, 1], [], []>} : vector<16x16xbf16>, vector<16x32xbf16>, vector<16x32xf32> -> vector<16x32xf32>
    %97 = vector.extract_strided_slice %41 {offsets = [0, 96], sizes = [16, 32], strides = [1, 1]} : vector<16x128xbf16> to vector<16x32xbf16>
    %98 = vector.extract_strided_slice %43 {offsets = [0, 96], sizes = [16, 32], strides = [1, 1]} : vector<16x128xbf16> to vector<16x32xbf16>
    %99 = vector.extract_strided_slice %45 {offsets = [0, 96], sizes = [16, 32], strides = [1, 1]} : vector<16x128xbf16> to vector<16x32xbf16>
    %cst_34 = arith.constant dense<0.000000e+00> : vector<16x16xf32>
    %100 = tpu.matmul %97, %98, %cst_34 {dimension_numbers = #tpu.dot_dimension_numbers<[1], [1], [0], [0], [0, 0, 1, 0], [], []>} : vector<16x32xbf16>, vector<16x32xbf16>, vector<16x16xf32> -> vector<16x16xf32>
    %101 = arith.addf %100, %5 : vector<16x16xf32>
    %cst_35 = arith.constant dense<0xFF800000> : vector<16xf32>
    %102 = vector.multi_reduction <maximumf>, %101, %cst_35 [1] : vector<16x16xf32> to vector<16xf32>
    %103 = vector.shape_cast %102 : vector<16xf32> to vector<16x1xf32>
    %104 = vector.broadcast %103 : vector<16x1xf32> to vector<16x16xf32>
    %105 = arith.subf %101, %104 : vector<16x16xf32>
    %106 = math.exp %105 : vector<16x16xf32>
    %cst_36 = arith.constant dense<0.000000e+00> : vector<16xf32>
    %107 = vector.multi_reduction <add>, %106, %cst_36 [1] : vector<16x16xf32> to vector<16xf32>
    %108 = vector.shape_cast %107 : vector<16xf32> to vector<16x1xf32>
    %109 = tpu.reciprocal %108 {approx = true} : vector<16x1xf32> -> vector<16x1xf32>
    %110 = vector.broadcast %109 : vector<16x1xf32> to vector<16x16xf32>
    %111 = arith.mulf %106, %110 : vector<16x16xf32>
    %112 = arith.truncf %111 : vector<16x16xf32> to vector<16x16xbf16>
    %cst_37 = arith.constant dense<0.000000e+00> : vector<16x32xf32>
    %113 = tpu.matmul %112, %99, %cst_37 {dimension_numbers = #tpu.dot_dimension_numbers<[1], [0], [0], [1], [0, 0, 1, 1], [], []>} : vector<16x16xbf16>, vector<16x32xbf16>, vector<16x32xf32> -> vector<16x32xf32>
    %114 = tpu.concatenate %62, %79, %96, %113 in 1 : vector<16x32xf32>, vector<16x32xf32>, vector<16x32xf32>, vector<16x32xf32> -> vector<16x128xf32>
    %115 = arith.truncf %114 : vector<16x128xf32> to vector<16x128xbf16>
    %c0_38 = arith.constant 0 : index
    %c0_39 = arith.constant 0 : index
    %c0_40 = arith.constant 0 : index
    %116 = vector.load %arg8[%c0_38, %c0_39, %c0_40] : memref<1x128x128xbf16, #tpu.memory_space<vmem>>, vector<1x128x128xbf16>
    %117 = vector.shape_cast %116 : vector<1x128x128xbf16> to vector<128x128xbf16>
    %cst_41 = arith.constant dense<0.000000e+00> : vector<16x128xf32>
    %118 = tpu.matmul %115, %117, %cst_41 {dimension_numbers = #tpu.dot_dimension_numbers<[1], [0], [0], [1], [0, 0, 1, 1], [], []>} : vector<16x128xbf16>, vector<128x128xbf16>, vector<16x128xf32> -> vector<16x128xf32>
    %c0_42 = arith.constant 0 : index
    %c0_43 = arith.constant 0 : index
    %c0_44 = arith.constant 0 : index
    %119 = vector.load %arg9[%c0_42, %c0_43, %c0_44] : memref<1x1x128xf32, #tpu.memory_space<vmem>>, vector<1x1x128xf32>
    %120 = vector.shape_cast %119 : vector<1x1x128xf32> to vector<1x128xf32>
    %121 = vector.broadcast %120 : vector<1x128xf32> to vector<16x128xf32>
    %122 = arith.addf %118, %121 : vector<16x128xf32>
    %123 = arith.addf %4, %122 : vector<16x128xf32>
    %c0_45 = arith.constant 0 : index
    %c0_46 = arith.constant 0 : index
    %c0_47 = arith.constant 0 : index
    %124 = vector.load %arg10[%c0_45, %c0_46, %c0_47] : memref<1x1x128xf32, #tpu.memory_space<vmem>>, vector<1x1x128xf32>
    %125 = vector.shape_cast %124 : vector<1x1x128xf32> to vector<1x128xf32>
    %c0_48 = arith.constant 0 : index
    %c0_49 = arith.constant 0 : index
    %c0_50 = arith.constant 0 : index
    %126 = vector.load %arg11[%c0_48, %c0_49, %c0_50] : memref<1x1x128xf32, #tpu.memory_space<vmem>>, vector<1x1x128xf32>
    %127 = vector.shape_cast %126 : vector<1x1x128xf32> to vector<1x128xf32>
    %cst_51 = arith.constant dense<0.000000e+00> : vector<16xf32>
    %128 = vector.multi_reduction <add>, %123, %cst_51 [1] : vector<16x128xf32> to vector<16xf32>
    %129 = vector.shape_cast %128 : vector<16xf32> to vector<16x1xf32>
    %cst_52 = arith.constant 1.280000e+02 : f32
    %130 = vector.broadcast %cst_52 : f32 to vector<16x1xf32>
    %131 = arith.divf %129, %130 : vector<16x1xf32>
    %132 = vector.broadcast %131 : vector<16x1xf32> to vector<16x128xf32>
    %133 = arith.subf %123, %132 : vector<16x128xf32>
    %134 = arith.mulf %133, %133 : vector<16x128xf32>
    %cst_53 = arith.constant dense<0.000000e+00> : vector<16xf32>
    %135 = vector.multi_reduction <add>, %134, %cst_53 [1] : vector<16x128xf32> to vector<16xf32>
    %136 = vector.shape_cast %135 : vector<16xf32> to vector<16x1xf32>
    %cst_54 = arith.constant 1.280000e+02 : f32
    %137 = vector.broadcast %cst_54 : f32 to vector<16x1xf32>
    %138 = arith.divf %136, %137 : vector<16x1xf32>
    %139 = vector.broadcast %131 : vector<16x1xf32> to vector<16x128xf32>
    %140 = arith.subf %123, %139 : vector<16x128xf32>
    %cst_55 = arith.constant 9.99999974E-6 : f32
    %141 = vector.broadcast %cst_55 : f32 to vector<16x1xf32>
    %142 = arith.addf %138, %141 : vector<16x1xf32>
    %143 = math.rsqrt %142 : vector<16x1xf32>
    %144 = vector.broadcast %143 : vector<16x1xf32> to vector<16x128xf32>
    %145 = arith.mulf %140, %144 : vector<16x128xf32>
    %146 = vector.broadcast %125 : vector<1x128xf32> to vector<16x128xf32>
    %147 = arith.mulf %145, %146 : vector<16x128xf32>
    %148 = vector.broadcast %127 : vector<1x128xf32> to vector<16x128xf32>
    %149 = arith.addf %147, %148 : vector<16x128xf32>
    %150 = arith.truncf %149 : vector<16x128xf32> to vector<16x128xbf16>
    %c0_56 = arith.constant 0 : index
    %c0_57 = arith.constant 0 : index
    %c0_58 = arith.constant 0 : index
    %151 = vector.load %arg12[%c0_56, %c0_57, %c0_58] : memref<1x128x512xbf16, #tpu.memory_space<vmem>>, vector<1x128x512xbf16>
    %152 = vector.shape_cast %151 : vector<1x128x512xbf16> to vector<128x512xbf16>
    %cst_59 = arith.constant dense<0.000000e+00> : vector<16x512xf32>
    %153 = tpu.matmul %150, %152, %cst_59 {dimension_numbers = #tpu.dot_dimension_numbers<[1], [0], [0], [1], [0, 0, 1, 1], [], []>} : vector<16x128xbf16>, vector<128x512xbf16>, vector<16x512xf32> -> vector<16x512xf32>
    %c0_60 = arith.constant 0 : index
    %c0_61 = arith.constant 0 : index
    %c0_62 = arith.constant 0 : index
    %154 = vector.load %arg13[%c0_60, %c0_61, %c0_62] : memref<1x1x512xf32, #tpu.memory_space<vmem>>, vector<1x1x512xf32>
    %155 = vector.shape_cast %154 : vector<1x1x512xf32> to vector<1x512xf32>
    %156 = vector.broadcast %155 : vector<1x512xf32> to vector<16x512xf32>
    %157 = arith.addf %153, %156 : vector<16x512xf32>
    %cst_63 = arith.constant 5.000000e-01 : f32
    %158 = vector.broadcast %cst_63 : f32 to vector<16x512xf32>
    %159 = arith.mulf %158, %157 : vector<16x512xf32>
    %160 = arith.mulf %157, %157 : vector<16x512xf32>
    %161 = arith.mulf %157, %160 : vector<16x512xf32>
    %cst_64 = arith.constant 4.471500e-02 : f32
    %162 = vector.broadcast %cst_64 : f32 to vector<16x512xf32>
    %163 = arith.mulf %162, %161 : vector<16x512xf32>
    %164 = arith.addf %157, %163 : vector<16x512xf32>
    %cst_65 = arith.constant 0.797884583 : f32
    %165 = vector.broadcast %cst_65 : f32 to vector<16x512xf32>
    %166 = arith.mulf %165, %164 : vector<16x512xf32>
    %167 = math.tanh %166 : vector<16x512xf32>
    %cst_66 = arith.constant 1.000000e+00 : f32
    %168 = vector.broadcast %cst_66 : f32 to vector<16x512xf32>
    %169 = arith.addf %168, %167 : vector<16x512xf32>
    %170 = arith.mulf %159, %169 : vector<16x512xf32>
    %171 = arith.truncf %170 : vector<16x512xf32> to vector<16x512xbf16>
    %c0_67 = arith.constant 0 : index
    %c0_68 = arith.constant 0 : index
    %c0_69 = arith.constant 0 : index
    %172 = vector.load %arg14[%c0_67, %c0_68, %c0_69] : memref<1x512x128xbf16, #tpu.memory_space<vmem>>, vector<1x512x128xbf16>
    %173 = vector.shape_cast %172 : vector<1x512x128xbf16> to vector<512x128xbf16>
    %cst_70 = arith.constant dense<0.000000e+00> : vector<16x128xf32>
    %174 = tpu.matmul %171, %173, %cst_70 {dimension_numbers = #tpu.dot_dimension_numbers<[1], [0], [0], [1], [0, 0, 1, 1], [], []>} : vector<16x512xbf16>, vector<512x128xbf16>, vector<16x128xf32> -> vector<16x128xf32>
    %c0_71 = arith.constant 0 : index
    %c0_72 = arith.constant 0 : index
    %c0_73 = arith.constant 0 : index
    %175 = vector.load %arg15[%c0_71, %c0_72, %c0_73] : memref<1x1x128xf32, #tpu.memory_space<vmem>>, vector<1x1x128xf32>
    %176 = vector.shape_cast %175 : vector<1x1x128xf32> to vector<1x128xf32>
    %177 = vector.broadcast %176 : vector<1x128xf32> to vector<16x128xf32>
    %178 = arith.addf %174, %177 : vector<16x128xf32>
    %179 = arith.addf %123, %178 : vector<16x128xf32>
    %c0_74 = arith.constant 0 : index
    %c0_75 = arith.constant 0 : index
    %c0_76 = arith.constant 0 : index
    %180 = vector.load %arg16[%c0_74, %c0_75, %c0_76] : memref<1x16x128xf32, #tpu.memory_space<vmem>>, vector<1x16x128xf32>
    %181 = vector.shape_cast %180 : vector<1x16x128xf32> to vector<16x128xf32>
    %182 = vector.shape_cast %179 : vector<16x128xf32> to vector<1x16x128xf32>
    tpu.vector_store %arg16[%c0_74, %c0_75, %c0_76], %182 {strides = array<i32>} : memref<1x16x128xf32, #tpu.memory_space<vmem>>, vector<1x16x128xf32>,
    return
  }
  func.func @transform_0(%arg0: i32, %arg1: i32) -> (i32, i32, i32) {
    %c0_i32 = arith.constant 0 : i32
    %c0_i32_0 = arith.constant 0 : i32
    %c0_i32_1 = arith.constant 0 : i32
    return %arg0, %c0_i32, %c0_i32_0 : i32, i32, i32
  }
  func.func @transform_1(%arg0: i32, %arg1: i32) -> (i32, i32) {
    %c0_i32 = arith.constant 0 : i32
    %c0_i32_0 = arith.constant 0 : i32
    %c0_i32_1 = arith.constant 0 : i32
    return %c0_i32, %c0_i32_0 : i32, i32
  }
  func.func @transform_2(%arg0: i32, %arg1: i32) -> (i32, i32, i32) {
    %c0_i32 = arith.constant 0 : i32
    %c0_i32_0 = arith.constant 0 : i32
    %c0_i32_1 = arith.constant 0 : i32
    return %arg1, %c0_i32, %c0_i32_0 : i32, i32, i32
  }
  func.func @transform_3(%arg0: i32, %arg1: i32) -> (i32, i32, i32) {
    %c0_i32 = arith.constant 0 : i32
    %c0_i32_0 = arith.constant 0 : i32
    %c0_i32_1 = arith.constant 0 : i32
    return %arg1, %c0_i32, %c0_i32_0 : i32, i32, i32
  }
  func.func @transform_4(%arg0: i32, %arg1: i32) -> (i32, i32, i32) {
    %c0_i32 = arith.constant 0 : i32
    %c0_i32_0 = arith.constant 0 : i32
    %c0_i32_1 = arith.constant 0 : i32
    return %arg1, %c0_i32, %c0_i32_0 : i32, i32, i32
  }
  func.func @transform_5(%arg0: i32, %arg1: i32) -> (i32, i32, i32) {
    %c0_i32 = arith.constant 0 : i32
    %c0_i32_0 = arith.constant 0 : i32
    %c0_i32_1 = arith.constant 0 : i32
    return %arg1, %c0_i32, %c0_i32_0 : i32, i32, i32
  }
  func.func @transform_6(%arg0: i32, %arg1: i32) -> (i32, i32, i32) {
    %c0_i32 = arith.constant 0 : i32
    %c0_i32_0 = arith.constant 0 : i32
    %c0_i32_1 = arith.constant 0 : i32
    return %arg1, %c0_i32, %c0_i32_0 : i32, i32, i32
  }
  func.func @transform_7(%arg0: i32, %arg1: i32) -> (i32, i32, i32) {
    %c0_i32 = arith.constant 0 : i32
    %c0_i32_0 = arith.constant 0 : i32
    %c0_i32_1 = arith.constant 0 : i32
    return %arg1, %c0_i32, %c0_i32_0 : i32, i32, i32
  }
  func.func @transform_8(%arg0: i32, %arg1: i32) -> (i32, i32, i32) {
    %c0_i32 = arith.constant 0 : i32
    %c0_i32_0 = arith.constant 0 : i32
    %c0_i32_1 = arith.constant 0 : i32
    return %arg1, %c0_i32, %c0_i32_0 : i32, i32, i32
  }
  func.func @transform_9(%arg0: i32, %arg1: i32) -> (i32, i32, i32) {
    %c0_i32 = arith.constant 0 : i32
    %c0_i32_0 = arith.constant 0 : i32
    %c0_i32_1 = arith.constant 0 : i32
    return %arg1, %c0_i32, %c0_i32_0 : i32, i32, i32
  }
  func.func @transform_10(%arg0: i32, %arg1: i32) -> (i32, i32, i32) {
    %c0_i32 = arith.constant 0 : i32
    %c0_i32_0 = arith.constant 0 : i32
    %c0_i32_1 = arith.constant 0 : i32
    return %arg1, %c0_i32, %c0_i32_0 : i32, i32, i32
  }
  func.func @transform_11(%arg0: i32, %arg1: i32) -> (i32, i32, i32) {
    %c0_i32 = arith.constant 0 : i32
    %c0_i32_0 = arith.constant 0 : i32
    %c0_i32_1 = arith.constant 0 : i32
    return %arg1, %c0_i32, %c0_i32_0 : i32, i32, i32
  }
  func.func @transform_12(%arg0: i32, %arg1: i32) -> (i32, i32, i32) {
    %c0_i32 = arith.constant 0 : i32
    %c0_i32_0 = arith.constant 0 : i32
    %c0_i32_1 = arith.constant 0 : i32
    return %arg1, %c0_i32, %c0_i32_0 : i32, i32, i32
  }
  func.func @transform_13(%arg0: i32, %arg1: i32) -> (i32, i32, i32) {
    %c0_i32 = arith.constant 0 : i32
    %c0_i32_0 = arith.constant 0 : i32
    %c0_i32_1 = arith.constant 0 : i32
    return %arg1, %c0_i32, %c0_i32_0 : i32, i32, i32
  }
  func.func @transform_14(%arg0: i32, %arg1: i32) -> (i32, i32, i32) {
    %c0_i32 = arith.constant 0 : i32
    %c0_i32_0 = arith.constant 0 : i32
    %c0_i32_1 = arith.constant 0 : i32
    return %arg0, %c0_i32, %c0_i32_0 : i32, i32, i32
  }
}

module attributes {stable_mosaic.version = 11 : i64} {
  func.func @_final_norm_head_kernel(%arg0: i32, %arg1: memref<1x16x128xf32, #tpu.memory_space<vmem>>, %arg2: memref<1x128xf32, #tpu.memory_space<vmem>>, %arg3: memref<1x128xf32, #tpu.memory_space<vmem>>, %arg4: memref<128x256xbf16, #tpu.memory_space<vmem>>, %arg5: memref<1x16x256xf32, #tpu.memory_space<vmem>>) attributes {dimension_semantics = [#tpu.dimension_semantics<parallel>], iteration_bounds = array<i64: 1>, scalar_prefetch = 0 : i64, scratch_operands = 0 : i64, tpu.core_type = #tpu.core_type<tc>, window_params = [{transform_indices = @transform_0, window_bounds = array<i64: 1, 16, 128>}, {pipeline_mode = #tpu.pipeline_mode<synchronous>, transform_indices = @transform_1, window_bounds = array<i64: 1, 128>}, {pipeline_mode = #tpu.pipeline_mode<synchronous>, transform_indices = @transform_2, window_bounds = array<i64: 1, 128>}, {pipeline_mode = #tpu.pipeline_mode<synchronous>, transform_indices = @transform_3, window_bounds = array<i64: 128, 256>}, {transform_indices = @transform_4, window_bounds = array<i64: 1, 16, 256>}]} {
    %c0 = arith.constant 0 : index
    %c0_0 = arith.constant 0 : index
    %c0_1 = arith.constant 0 : index
    %0 = vector.load %arg1[%c0, %c0_0, %c0_1] : memref<1x16x128xf32, #tpu.memory_space<vmem>>, vector<1x16x128xf32>
    %1 = vector.shape_cast %0 : vector<1x16x128xf32> to vector<16x128xf32>
    %c0_2 = arith.constant 0 : index
    %c0_3 = arith.constant 0 : index
    %2 = vector.load %arg2[%c0_2, %c0_3] : memref<1x128xf32, #tpu.memory_space<vmem>>, vector<1x128xf32>
    %c0_4 = arith.constant 0 : index
    %c0_5 = arith.constant 0 : index
    %3 = vector.load %arg3[%c0_4, %c0_5] : memref<1x128xf32, #tpu.memory_space<vmem>>, vector<1x128xf32>
    %cst = arith.constant dense<0.000000e+00> : vector<16xf32>
    %4 = vector.multi_reduction <add>, %1, %cst [1] : vector<16x128xf32> to vector<16xf32>
    %5 = vector.shape_cast %4 : vector<16xf32> to vector<16x1xf32>
    %cst_6 = arith.constant 1.280000e+02 : f32
    %6 = vector.broadcast %cst_6 : f32 to vector<16x1xf32>
    %7 = arith.divf %5, %6 : vector<16x1xf32>
    %8 = vector.broadcast %7 : vector<16x1xf32> to vector<16x128xf32>
    %9 = arith.subf %1, %8 : vector<16x128xf32>
    %10 = arith.mulf %9, %9 : vector<16x128xf32>
    %cst_7 = arith.constant dense<0.000000e+00> : vector<16xf32>
    %11 = vector.multi_reduction <add>, %10, %cst_7 [1] : vector<16x128xf32> to vector<16xf32>
    %12 = vector.shape_cast %11 : vector<16xf32> to vector<16x1xf32>
    %cst_8 = arith.constant 1.280000e+02 : f32
    %13 = vector.broadcast %cst_8 : f32 to vector<16x1xf32>
    %14 = arith.divf %12, %13 : vector<16x1xf32>
    %15 = vector.broadcast %7 : vector<16x1xf32> to vector<16x128xf32>
    %16 = arith.subf %1, %15 : vector<16x128xf32>
    %cst_9 = arith.constant 9.99999974E-6 : f32
    %17 = vector.broadcast %cst_9 : f32 to vector<16x1xf32>
    %18 = arith.addf %14, %17 : vector<16x1xf32>
    %19 = math.rsqrt %18 : vector<16x1xf32>
    %20 = vector.broadcast %19 : vector<16x1xf32> to vector<16x128xf32>
    %21 = arith.mulf %16, %20 : vector<16x128xf32>
    %22 = vector.broadcast %2 : vector<1x128xf32> to vector<16x128xf32>
    %23 = arith.mulf %21, %22 : vector<16x128xf32>
    %24 = vector.broadcast %3 : vector<1x128xf32> to vector<16x128xf32>
    %25 = arith.addf %23, %24 : vector<16x128xf32>
    %26 = arith.truncf %25 : vector<16x128xf32> to vector<16x128xbf16>
    %c0_10 = arith.constant 0 : index
    %c0_11 = arith.constant 0 : index
    %27 = vector.load %arg4[%c0_10, %c0_11] : memref<128x256xbf16, #tpu.memory_space<vmem>>, vector<128x256xbf16>
    %cst_12 = arith.constant dense<0.000000e+00> : vector<16x256xf32>
    %28 = tpu.matmul %26, %27, %cst_12 {dimension_numbers = #tpu.dot_dimension_numbers<[1], [0], [0], [1], [0, 0, 1, 1], [], []>} : vector<16x128xbf16>, vector<128x256xbf16>, vector<16x256xf32> -> vector<16x256xf32>
    %c0_13 = arith.constant 0 : index
    %c0_14 = arith.constant 0 : index
    %c0_15 = arith.constant 0 : index
    %29 = vector.load %arg5[%c0_13, %c0_14, %c0_15] : memref<1x16x256xf32, #tpu.memory_space<vmem>>, vector<1x16x256xf32>
    %30 = vector.shape_cast %29 : vector<1x16x256xf32> to vector<16x256xf32>
    %31 = vector.shape_cast %28 : vector<16x256xf32> to vector<1x16x256xf32>
    tpu.vector_store %arg5[%c0_13, %c0_14, %c0_15], %31 {strides = array<i32>} : memref<1x16x256xf32, #tpu.memory_space<vmem>>, vector<1x16x256xf32>,
    return
  }
  func.func @transform_0(%arg0: i32) -> (i32, i32, i32) {
    %c0_i32 = arith.constant 0 : i32
    %c0_i32_0 = arith.constant 0 : i32
    %c0_i32_1 = arith.constant 0 : i32
    return %arg0, %c0_i32, %c0_i32_0 : i32, i32, i32
  }
  func.func @transform_1(%arg0: i32) -> (i32, i32) {
    %c0_i32 = arith.constant 0 : i32
    %c0_i32_0 = arith.constant 0 : i32
    %c0_i32_1 = arith.constant 0 : i32
    return %c0_i32, %c0_i32_0 : i32, i32
  }
  func.func @transform_2(%arg0: i32) -> (i32, i32) {
    %c0_i32 = arith.constant 0 : i32
    %c0_i32_0 = arith.constant 0 : i32
    %c0_i32_1 = arith.constant 0 : i32
    return %c0_i32, %c0_i32_0 : i32, i32
  }
  func.func @transform_3(%arg0: i32) -> (i32, i32) {
    %c0_i32 = arith.constant 0 : i32
    %c0_i32_0 = arith.constant 0 : i32
    %c0_i32_1 = arith.constant 0 : i32
    return %c0_i32, %c0_i32_0 : i32, i32
  }
  func.func @transform_4(%arg0: i32) -> (i32, i32, i32) {
    %c0_i32 = arith.constant 0 : i32
    %c0_i32_0 = arith.constant 0 : i32
    %c0_i32_1 = arith.constant 0 : i32
    return %arg0, %c0_i32, %c0_i32_0 : i32, i32, i32
  }
}

</mosaic_0001>

<llo_original>
// kernel: gpt2_model.3
$region0: #{gpt2_model.3}
  #allocation0 [shape = 'u32[]', space=smem, size = 0x4, offset = 0x4, fixed_abs, tag = 'smem constant byte address 0x4 - core index']
  #allocation1 [shape = 'u32[72,128]{1,0:T(1,128)}', space=vmem, size = 0x9000, scoped, tag = 'internal scratch']
  %s0 = inlined_call_operand.vmem [shape: f32[1,16,128], index: 0, kind: input, shape index: {}]
  %s1 = inlined_call_operand.vmem [shape: f32[1,128], index: 1, kind: input, shape index: {}]
  %s2 = inlined_call_operand.vmem [shape: f32[1,128], index: 2, kind: input, shape index: {}]
  %s3 = inlined_call_operand.vmem [shape: bf16[128,256], index: 3, kind: input, shape index: {}]
  %s4 = inlined_call_operand.hbm [shape: f32[1,16,256], index: 4, kind: output, shape index: {}]
  %s5 = sld [smem:[#allocation0]]
  $region26: #{gpt2_model.3} parent=0
    _
  %s7 = ssub.s32 1, %s5
  %s8 = scalar_select 0, %s7, %s5
  $region1: #{gpt2_model.3} parent=0
    #allocation2 [shape = 'u8[16384]{0}', space=vmem, size = 0x4000, scoped, tag = 'output window, operand 0, single buffered']
    #allocation3 [shape = 's32[1]{0}', space=sflag, size = 0x4, scoped, tag = 'scoped memory for gpt2_model.3']
    %9 = vsyncpa [#allocation3], 0
    // Predicated region
    $region2: #{gpt2_model.3} parent=1 // pred_check
      _
    $region3: #{gpt2_model.3} parent=1 // pred_check_branch
      %11 = sbr.rel (0) target = $region5
    $region4: #{gpt2_model.3} parent=1 // pred_region
      _
    $region5: #{gpt2_model.3} parent=1 // pred_fallthru
      _
    // Predicated region
    $region6: #{gpt2_model.3} parent=1 // pred_check
      _
    $region7: #{gpt2_model.3} parent=1 // pred_check_branch
      %13 = sbr.rel (0) target = $region9
    $region8: #{gpt2_model.3} parent=1 // pred_region
      _
    $region9: #{gpt2_model.3} parent=1 // pred_fallthru
      _
    // Predicated region
    $region10: #{gpt2_model.3} parent=1 // pred_check
      _
    $region11: #{gpt2_model.3} parent=1 // pred_check_branch
      %15 = sbr.rel (0) target = $region13
    $region12: #{gpt2_model.3} parent=1 // pred_region
      _
    $region13: #{gpt2_model.3} parent=1 // pred_fallthru
      _
    // Predicated region
    $region14: #{gpt2_model.3} parent=1 // pred_check
      _
    $region15: #{gpt2_model.3} parent=1 // pred_check_branch
      %17 = sbr.rel (0) target = $region17
    $region16: #{gpt2_model.3} parent=1 // pred_region
      _
    $region17: #{gpt2_model.3} parent=1 // pred_fallthru
      _
    %v18 = vld [vmem:[%s0] sm:$0xff]
    %v19 = vld [vmem:[%s0 + $0x8] sm:$0xff]
    %v20 = vld [vmem:[%s1] sm:$0x1]
    %v21 = vld [vmem:[%s2] sm:$0x1]
    %22 = vadd.xlane.f32.xlu0 %v18
    %v23 = vpop.xlane.xlu0 %22
    %24 = vadd.xlane.f32.xlu0 %v19
    %v25 = vpop.xlane.xlu0 %24
    %v26 = vrcp.pop 128.0
    %v27 = vmul.f32 128.0, %v26
    %v28 = vsub.f32 1.0, %v27
    %v29 = vmul.f32 %v26, %v28
    %v30 = vadd.f32 %v26, %v29
    %vm31 = vweird.f32 %v26
    %v32 = vsel %vm31, %v26, %v30
    %v33 = vmul.f32 %v23, %v32
    %v34 = vmul.f32 %v25, %v32
    %v35 = vsub.f32 %v18, %v33
    %v36 = vsub.f32 %v19, %v34
    %v37 = vmul.f32 %v35, %v35
    %v38 = vmul.f32 %v36, %v36
    %39 = vadd.xlane.f32.xlu0 %v37
    %v40 = vpop.xlane.xlu0 %39
    %41 = vadd.xlane.f32.xlu0 %v38
    %v42 = vpop.xlane.xlu0 %41
    %v43 = vmul.f32 %v40, %v32
    %v44 = vmul.f32 %v42, %v32
    %v45 = vadd.f32 %v43, 1e-05
    %v46 = vadd.f32 %v44, 1e-05
    %v47 = vrsqrt.pop %v45
    %v48 = vmul.f32 %v47, %v45
    %v49 = vmul.f32 %v48, %v47
    %v50 = vmul.f32 0.5, %v49
    %v51 = vsub.f32 1.5, %v50
    %v52 = vmul.f32 %v47, %v51
    %vm53 = vweird.f32 %v45
    %vm54 = vweird.f32 %v47
    %vm55 = vmor %vm53, %vm54
    %v56 = vsel %vm55, %v47, %v52
    %v57 = vrsqrt.pop %v46
    %v58 = vmul.f32 %v57, %v46
    %v59 = vmul.f32 %v58, %v57
    %v60 = vmul.f32 0.5, %v59
    %v61 = vsub.f32 1.5, %v60
    %v62 = vmul.f32 %v57, %v61
    %vm63 = vweird.f32 %v46
    %vm64 = vweird.f32 %v57
    %vm65 = vmor %vm63, %vm64
    %v66 = vsel %vm65, %v57, %v62
    %v67 = vmul.f32 %v35, %v56
    %v68 = vmul.f32 %v36, %v66
    %v70 = vperm.slane %v20, 0
    %v72 = vmul.f32 %v67, %v70
    %v73 = vmul.f32 %v68, %v70
    %v75 = vperm.slane %v21, 0
    %v77 = vadd.f32 %v72, %v75
    %v78 = vadd.f32 %v73, %v75
    %v79 = vpack.c.bf16 %v78, %v77
    %v80 = vld [vmem:[%s3] sm:$0xff]
    %v81 = vld [vmem:[%s3 + $0x8] sm:$0xff]
    %v82 = vld [vmem:[%s3 + $0x10] sm:$0xff]
    %v83 = vld [vmem:[%s3 + $0x18] sm:$0xff]
    %v84 = vld [vmem:[%s3 + $0x20] sm:$0xff]
    %v85 = vld [vmem:[%s3 + $0x28] sm:$0xff]
    %v86 = vld [vmem:[%s3 + $0x30] sm:$0xff]
    %v87 = vld [vmem:[%s3 + $0x38] sm:$0xff]
    %v88 = vld [vmem:[%s3 + $0x40] sm:$0xff]
    %v89 = vld [vmem:[%s3 + $0x48] sm:$0xff]
    %v90 = vld [vmem:[%s3 + $0x50] sm:$0xff]
    %v91 = vld [vmem:[%s3 + $0x58] sm:$0xff]
    %v92 = vld [vmem:[%s3 + $0x60] sm:$0xff]
    %v93 = vld [vmem:[%s3 + $0x68] sm:$0xff]
    %v94 = vld [vmem:[%s3 + $0x70] sm:$0xff]
    %v95 = vld [vmem:[%s3 + $0x78] sm:$0xff]
    %v112 = vunpack.c.l.b16 %v80
    %v113 = vunpack.c.h.b16 %v80
    %v114 = vunpack.c.l.b16 %v81
    %v115 = vunpack.c.h.b16 %v81
    %v116 = vunpack.c.l.b16 %v82
    %v117 = vunpack.c.h.b16 %v82
    %v118 = vunpack.c.l.b16 %v83
    %v119 = vunpack.c.h.b16 %v83
    %v120 = vunpack.c.l.b16 %v84
    %v121 = vunpack.c.h.b16 %v84
    %v122 = vunpack.c.l.b16 %v85
    %v123 = vunpack.c.h.b16 %v85
    %v124 = vunpack.c.l.b16 %v86
    %v125 = vunpack.c.h.b16 %v86
    %v126 = vunpack.c.l.b16 %v87
    %v127 = vunpack.c.h.b16 %v87
    %v128 = vunpack.c.l.b16 %v88
    %v129 = vunpack.c.h.b16 %v88
    %v130 = vunpack.c.l.b16 %v89
    %v131 = vunpack.c.h.b16 %v89
    %v132 = vunpack.c.l.b16 %v90
    %v133 = vunpack.c.h.b16 %v90
    %v134 = vunpack.c.l.b16 %v91
    %v135 = vunpack.c.h.b16 %v91
    %v136 = vunpack.c.l.b16 %v92
    %v137 = vunpack.c.h.b16 %v92
    %v138 = vunpack.c.l.b16 %v93
    %v139 = vunpack.c.h.b16 %v93
    %v140 = vunpack.c.l.b16 %v94
    %v141 = vunpack.c.h.b16 %v94
    %v142 = vunpack.c.l.b16 %v95
    %v143 = vunpack.c.h.b16 %v95
    %v144 = vpack.c.b16 %v114, %v112
    %v145 = vpack.c.b16 %v115, %v113
    %v146 = vpack.c.b16 %v118, %v116
    %v147 = vpack.c.b16 %v119, %v117
    %v148 = vpack.c.b16 %v122, %v120
    %v149 = vpack.c.b16 %v123, %v121
    %v150 = vpack.c.b16 %v126, %v124
    %v151 = vpack.c.b16 %v127, %v125
    %v152 = vpack.c.b16 %v130, %v128
    %v153 = vpack.c.b16 %v131, %v129
    %v154 = vpack.c.b16 %v134, %v132
    %v155 = vpack.c.b16 %v135, %v133
    %v156 = vpack.c.b16 %v138, %v136
    %v157 = vpack.c.b16 %v139, %v137
    %v158 = vpack.c.b16 %v142, %v140
    %v159 = vpack.c.b16 %v143, %v141
    %176 = vmatpush.bf16.msra.mxu0 %v158
    %177 = vmatpush.bf16.msra.mxu0 %v156
    %178 = vmatpush.bf16.msra.mxu0 %v154
    %179 = vmatpush.bf16.msra.mxu0 %v152
    %180 = vmatpush.bf16.msra.mxu0 %v150
    %181 = vmatpush.bf16.msra.mxu0 %v148
    %182 = vmatpush.bf16.msra.mxu0 %v146
    %183 = vmatpush.bf16.msra.mxu0 %v144
    %184 = vmatmul.bf16.gmra.mxu0 %v79
    %v185 = vpop.f32.mrf.mxu0
    %v186 = vadd.f32 0.0, %v185
    %v187 = vpop.f32.mrf.mxu0
    %v188 = vadd.f32 0.0, %v187
    %189 = vdwg.mxu0
    %190 = vmatpush.bf16.msra.mxu0 %v159
    %191 = vmatpush.bf16.msra.mxu0 %v157
    %192 = vmatpush.bf16.msra.mxu0 %v155
    %193 = vmatpush.bf16.msra.mxu0 %v153
    %194 = vmatpush.bf16.msra.mxu0 %v151
    %195 = vmatpush.bf16.msra.mxu0 %v149
    %196 = vmatpush.bf16.msra.mxu0 %v147
    %197 = vmatpush.bf16.msra.mxu0 %v145
    %198 = vmatmul.bf16.gmra.mxu0 %v79
    %v199 = vpop.f32.mrf.mxu0
    %v200 = vadd.f32 0.0, %v199
    %v201 = vpop.f32.mrf.mxu0
    %v202 = vadd.f32 0.0, %v201
    %203 = vdwg.mxu0
    %204 = vst [vmem:[#allocation2] sm:$0xff] %v186
    %205 = vst [vmem:[#allocation2 + $0x8] sm:$0xff] %v200
    %206 = vst [vmem:[#allocation2 + $0x10] sm:$0xff] %v188
    %207 = vst [vmem:[#allocation2 + $0x18] sm:$0xff] %v202
    // Predicated region
    $region18: #{gpt2_model.3} parent=1 // pred_check
      _
    $region19: #{gpt2_model.3} parent=1 // pred_check_branch
      %209 = sbr.rel (0) target = $region21
    $region20: #{gpt2_model.3} parent=1 // pred_region
      %211 = vsyncadd [#allocation3], 0
      %s212 = sshll.u32 [#allocation2], 4
      %s213 = int_to_ptr.vmem [resolvable:$true] %s212
      %s214 = sshll.u32 %s4, 4
      %s215 = int_to_ptr.hbm [resolvable:$true] %s214
      %220 = dma.vmem_to_hbm [thread:$0]  %s213, 512, %s215, [#allocation3], 256, 256, 16
    $region21: #{gpt2_model.3} parent=1 // pred_fallthru
      _
    // Predicated region
    $region22: #{gpt2_model.3} parent=1 // pred_check
      _
    $region23: #{gpt2_model.3} parent=1 // pred_check_branch
      %222 = sbr.rel (0) target = $region25
    $region24: #{gpt2_model.3} parent=1 // pred_region
      %224 = dma.done [#allocation3], 512
    $region25: #{gpt2_model.3} parent=1 // pred_fallthru
      _
    %225 = vsyncpa [#allocation3], 1

// kernel: gpt2_model.2
$region0: #{gpt2_model.2}
  #allocation0 [shape = 'u32[]', space=smem, size = 0x4, offset = 0x4, fixed_abs, tag = 'smem constant byte address 0x4 - core index']
  #allocation1 [shape = 'u32[72,128]{1,0:T(1,128)}', space=vmem, size = 0x9000, scoped, tag = 'internal scratch']
  %s0 = inlined_call_operand.vmem [shape: f32[1,16,128], index: 0, kind: input, shape index: {}]
  %s1 = inlined_call_operand.vmem [shape: f32[16,16], index: 1, kind: input, shape index: {}]
  %s2 = inlined_call_operand.vmem [shape: f32[2,1,128], index: 2, kind: input, shape index: {}]
  %s3 = inlined_call_operand.vmem [shape: f32[2,1,128], index: 3, kind: input, shape index: {}]
  %s4 = inlined_call_operand.vmem [shape: bf16[2,128,384], index: 4, kind: input, shape index: {}]
  %s5 = inlined_call_operand.vmem [shape: f32[2,1,384], index: 5, kind: input, shape index: {}]
  %s6 = inlined_call_operand.vmem [shape: bf16[2,128,128], index: 6, kind: input, shape index: {}]
  %s7 = inlined_call_operand.vmem [shape: f32[2,1,128], index: 7, kind: input, shape index: {}]
  %s8 = inlined_call_operand.vmem [shape: f32[2,1,128], index: 8, kind: input, shape index: {}]
  %s9 = inlined_call_operand.vmem [shape: f32[2,1,128], index: 9, kind: input, shape index: {}]
  %s10 = inlined_call_operand.vmem [shape: bf16[2,128,512], index: 10, kind: input, shape index: {}]
  %s11 = inlined_call_operand.vmem [shape: f32[2,1,512], index: 11, kind: input, shape index: {}]
  %s12 = inlined_call_operand.vmem [shape: bf16[2,512,128], index: 12, kind: input, shape index: {}]
  %s13 = inlined_call_operand.vmem [shape: f32[2,1,128], index: 13, kind: input, shape index: {}]
  %s14 = inlined_call_operand.vmem [shape: f32[1,16,128], index: 14, kind: output, shape index: {}]
  %s15 = sld [smem:[#allocation0]]
  $region93: #{gpt2_model.2} parent=0
    _
  %s17 = ssub.s32 1, %s15
  %s18 = scalar_select 0, %s17, %s15
  loop: start=0, step=1, limit=4
  $region2: #{gpt2_model.2} parent=0 // loop_pre_header
    _
  $region3: #{gpt2_model.2} parent=0 // loop_header
    %s20 = sphi 0, %s24
    %p21 = scmp.ge.s32.totalorder %s20, 4
    %s27 = sphi 0, %s39
    %s28 = sphi 0, %s35
    %s29 = sphi 0, %s27
    %s30 = sphi 0, %s28
    %s31 = sphi 0, %s29
    %s32 = sphi 0, %s30
    %s42 = sphi 0, %s44
    %s45 = sphi 0, %s42
    %s46 = sphi 0, %s45
    %s62 = sphi 0, %s46
    %s66 = sphi 0, %s66
    %s68 = sphi 0, %s66
    %s69 = sphi 0, %s68
    %s83 = sphi 0, %s69
    %s89 = sphi 0, %s91
    %s92 = sphi 0, %s89
    %s93 = sphi 0, %s92
    %s109 = sphi 0, %s93
    %s115 = sphi 0, %s117
    %s118 = sphi 0, %s115
    %s119 = sphi 0, %s118
    %s135 = sphi 0, %s119
    %s141 = sphi 0, %s143
    %s144 = sphi 0, %s141
    %s145 = sphi 0, %s144
    %s161 = sphi 0, %s145
    %s167 = sphi 0, %s169
    %s170 = sphi 0, %s167
    %s171 = sphi 0, %s170
    %s187 = sphi 0, %s171
    %s193 = sphi 0, %s195
    %s196 = sphi 0, %s193
    %s197 = sphi 0, %s196
    %s213 = sphi 0, %s197
    %s219 = sphi 0, %s221
    %s222 = sphi 0, %s219
    %s223 = sphi 0, %s222
    %s239 = sphi 0, %s223
    %s245 = sphi 0, %s247
    %s248 = sphi 0, %s245
    %s249 = sphi 0, %s248
    %s265 = sphi 0, %s249
    %s271 = sphi 0, %s273
    %s274 = sphi 0, %s271
    %s275 = sphi 0, %s274
    %s291 = sphi 0, %s275
    %s297 = sphi 0, %s299
    %s300 = sphi 0, %s297
    %s301 = sphi 0, %s300
    %s317 = sphi 0, %s301
    %s323 = sphi 0, %s325
    %s326 = sphi 0, %s323
    %s327 = sphi 0, %s326
    %s343 = sphi 0, %s327
    %s349 = sphi 0, %s351
    %s352 = sphi 0, %s349
    %s353 = sphi 0, %s352
    %s369 = sphi 0, %s353
    %s375 = sphi 0, %s377
    %s378 = sphi 0, %s375
    %s379 = sphi 0, %s378
    %s395 = sphi 0, %s379
    %s401 = sphi 0, %s403
    %s404 = sphi 0, %s401
    %s405 = sphi 0, %s404
    %s421 = sphi 0, %s405
  $region4: #{gpt2_model.2} parent=0 // loop_header_branch
    %23 = sbr.rel (%p21) target = $region8
  $region5: #{gpt2_model.2} parent=0 // loop_body
    %s25 = ssub.s32 %s20, 1
    %s26 = ssub.s32 %s20, 2
    %s33 = sadd.s32 1, %s28
    %p34 = scmp.ge.s32.totalorder %s33, 2
    %s35 = scalar_select %p34, 0, %s33
    %s36 = sadd.s32 1, %s27
    %s37 = scalar_select %p34, %s36, %s27
    %p38 = scmp.ge.s32.totalorder %s37, 1
    %s39 = scalar_select %p38, 0, %s37
    %s40 = ssub.s32 %s27, %s39
    %p41 = scmp.eq.s32.totalorder %s40, 0
    %s43 = sadd.s32 %s42, 1
    %s44 = scalar_select %p41, %s42, %s43
    %p47 = pneg %p41
    %p48 = scmp.eq.s32.totalorder %s20, 1
    %p49 = por %p47, %p48
    %p50 = scmp.ne.s32.totalorder %s42, %s45
    %p51 = scmp.eq.s32.totalorder %s20, 0
    %p52 = por %p50, %p51
    %p53 = scmp.ne.s32.totalorder %s42, %s45
    %p54 = scmp.eq.s32.totalorder %s25, 1
    %p55 = por %p53, %p54
    %p56 = scmp.ne.s32.totalorder %s45, %s46
    %p57 = scmp.eq.s32.totalorder %s25, 0
    %p58 = por %p56, %p57
    %p59 = scmp.ne.s32.totalorder %s45, %s46
    %p60 = scmp.eq.s32.totalorder %s26, 1
    %p61 = por %p59, %p60
    %p63 = scmp.ne.s32.totalorder %s46, %s62
    %p64 = scmp.eq.s32.totalorder %s26, 0
    %p65 = por %p63, %p64
    %s67 = sadd.s32 %s66, 1
    %p70 = scmp.eq.s32.totalorder %s20, 1
    %p71 = scmp.ne.s32.totalorder %s66, %s68
    %p72 = scmp.eq.s32.totalorder %s20, 0
    %p73 = por %p71, %p72
    %p74 = scmp.ne.s32.totalorder %s66, %s68
    %p75 = scmp.eq.s32.totalorder %s25, 1
    %p76 = por %p74, %p75
    %p77 = scmp.ne.s32.totalorder %s68, %s69
    %p78 = scmp.eq.s32.totalorder %s25, 0
    %p79 = por %p77, %p78
    %p80 = scmp.ne.s32.totalorder %s68, %s69
    %p81 = scmp.eq.s32.totalorder %s26, 1
    %p82 = por %p80, %p81
    %p84 = scmp.ne.s32.totalorder %s69, %s83
    %p85 = scmp.eq.s32.totalorder %s26, 0
    %p86 = por %p84, %p85
    %s87 = ssub.s32 %s28, %s35
    %p88 = scmp.eq.s32.totalorder %s87, 0
    %s90 = sadd.s32 %s89, 1
    %s91 = scalar_select %p88, %s89, %s90
    %p94 = pneg %p88
    %p95 = scmp.eq.s32.totalorder %s20, 1
    %p96 = por %p94, %p95
    %p97 = scmp.ne.s32.totalorder %s89, %s92
    %p98 = scmp.eq.s32.totalorder %s20, 0
    %p99 = por %p97, %p98
    %p100 = scmp.ne.s32.totalorder %s89, %s92
    %p101 = scmp.eq.s32.totalorder %s25, 1
    %p102 = por %p100, %p101
    %p103 = scmp.ne.s32.totalorder %s92, %s93
    %p104 = scmp.eq.s32.totalorder %s25, 0
    %p105 = por %p103, %p104
    %p106 = scmp.ne.s32.totalorder %s92, %s93
    %p107 = scmp.eq.s32.totalorder %s26, 1
    %p108 = por %p106, %p107
    %p110 = scmp.ne.s32.totalorder %s93, %s109
    %p111 = scmp.eq.s32.totalorder %s26, 0
    %p112 = por %p110, %p111
    %s113 = ssub.s32 %s28, %s35
    %p114 = scmp.eq.s32.totalorder %s113, 0
    %s116 = sadd.s32 %s115, 1
    %s117 = scalar_select %p114, %s115, %s116
    %p120 = pneg %p114
    %p121 = scmp.eq.s32.totalorder %s20, 1
    %p122 = por %p120, %p121
    %p123 = scmp.ne.s32.totalorder %s115, %s118
    %p124 = scmp.eq.s32.totalorder %s20, 0
    %p125 = por %p123, %p124
    %p126 = scmp.ne.s32.totalorder %s115, %s118
    %p127 = scmp.eq.s32.totalorder %s25, 1
    %p128 = por %p126, %p127
    %p129 = scmp.ne.s32.totalorder %s118, %s119
    %p130 = scmp.eq.s32.totalorder %s25, 0
    %p131 = por %p129, %p130
    %p132 = scmp.ne.s32.totalorder %s118, %s119
    %p133 = scmp.eq.s32.totalorder %s26, 1
    %p134 = por %p132, %p133
    %p136 = scmp.ne.s32.totalorder %s119, %s135
    %p137 = scmp.eq.s32.totalorder %s26, 0
    %p138 = por %p136, %p137
    %s139 = ssub.s32 %s28, %s35
    %p140 = scmp.eq.s32.totalorder %s139, 0
    %s142 = sadd.s32 %s141, 1
    %s143 = scalar_select %p140, %s141, %s142
    %p146 = pneg %p140
    %p147 = scmp.eq.s32.totalorder %s20, 1
    %p148 = por %p146, %p147
    %p149 = scmp.ne.s32.totalorder %s141, %s144
    %p150 = scmp.eq.s32.totalorder %s20, 0
    %p151 = por %p149, %p150
    %p152 = scmp.ne.s32.totalorder %s141, %s144
    %p153 = scmp.eq.s32.totalorder %s25, 1
    %p154 = por %p152, %p153
    %p155 = scmp.ne.s32.totalorder %s144, %s145
    %p156 = scmp.eq.s32.totalorder %s25, 0
    %p157 = por %p155, %p156
    %p158 = scmp.ne.s32.totalorder %s144, %s145
    %p159 = scmp.eq.s32.totalorder %s26, 1
    %p160 = por %p158, %p159
    %p162 = scmp.ne.s32.totalorder %s145, %s161
    %p163 = scmp.eq.s32.totalorder %s26, 0
    %p164 = por %p162, %p163
    %s165 = ssub.s32 %s28, %s35
    %p166 = scmp.eq.s32.totalorder %s165, 0
    %s168 = sadd.s32 %s167, 1
    %s169 = scalar_select %p166, %s167, %s168
    %p172 = pneg %p166
    %p173 = scmp.eq.s32.totalorder %s20, 1
    %p174 = por %p172, %p173
    %p175 = scmp.ne.s32.totalorder %s167, %s170
    %p176 = scmp.eq.s32.totalorder %s20, 0
    %p177 = por %p175, %p176
    %p178 = scmp.ne.s32.totalorder %s167, %s170
    %p179 = scmp.eq.s32.totalorder %s25, 1
    %p180 = por %p178, %p179
    %p181 = scmp.ne.s32.totalorder %s170, %s171
    %p182 = scmp.eq.s32.totalorder %s25, 0
    %p183 = por %p181, %p182
    %p184 = scmp.ne.s32.totalorder %s170, %s171
    %p185 = scmp.eq.s32.totalorder %s26, 1
    %p186 = por %p184, %p185
    %p188 = scmp.ne.s32.totalorder %s171, %s187
    %p189 = scmp.eq.s32.totalorder %s26, 0
    %p190 = por %p188, %p189
    %s191 = ssub.s32 %s28, %s35
    %p192 = scmp.eq.s32.totalorder %s191, 0
    %s194 = sadd.s32 %s193, 1
    %s195 = scalar_select %p192, %s193, %s194
    %p198 = pneg %p192
    %p199 = scmp.eq.s32.totalorder %s20, 1
    %p200 = por %p198, %p199
    %p201 = scmp.ne.s32.totalorder %s193, %s196
    %p202 = scmp.eq.s32.totalorder %s20, 0
    %p203 = por %p201, %p202
    %p204 = scmp.ne.s32.totalorder %s193, %s196
    %p205 = scmp.eq.s32.totalorder %s25, 1
    %p206 = por %p204, %p205
    %p207 = scmp.ne.s32.totalorder %s196, %s197
    %p208 = scmp.eq.s32.totalorder %s25, 0
    %p209 = por %p207, %p208
    %p210 = scmp.ne.s32.totalorder %s196, %s197
    %p211 = scmp.eq.s32.totalorder %s26, 1
    %p212 = por %p210, %p211
    %p214 = scmp.ne.s32.totalorder %s197, %s213
    %p215 = scmp.eq.s32.totalorder %s26, 0
    %p216 = por %p214, %p215
    %s217 = ssub.s32 %s28, %s35
    %p218 = scmp.eq.s32.totalorder %s217, 0
    %s220 = sadd.s32 %s219, 1
    %s221 = scalar_select %p218, %s219, %s220
    %p224 = pneg %p218
    %p225 = scmp.eq.s32.totalorder %s20, 1
    %p226 = por %p224, %p225
    %p227 = scmp.ne.s32.totalorder %s219, %s222
    %p228 = scmp.eq.s32.totalorder %s20, 0
    %p229 = por %p227, %p228
    %p230 = scmp.ne.s32.totalorder %s219, %s222
    %p231 = scmp.eq.s32.totalorder %s25, 1
    %p232 = por %p230, %p231
    %p233 = scmp.ne.s32.totalorder %s222, %s223
    %p234 = scmp.eq.s32.totalorder %s25, 0
    %p235 = por %p233, %p234
    %p236 = scmp.ne.s32.totalorder %s222, %s223
    %p237 = scmp.eq.s32.totalorder %s26, 1
    %p238 = por %p236, %p237
    %p240 = scmp.ne.s32.totalorder %s223, %s239
    %p241 = scmp.eq.s32.totalorder %s26, 0
    %p242 = por %p240, %p241
    %s243 = ssub.s32 %s28, %s35
    %p244 = scmp.eq.s32.totalorder %s243, 0
    %s246 = sadd.s32 %s245, 1
    %s247 = scalar_select %p244, %s245, %s246
    %p250 = pneg %p244
    %p251 = scmp.eq.s32.totalorder %s20, 1
    %p252 = por %p250, %p251
    %p253 = scmp.ne.s32.totalorder %s245, %s248
    %p254 = scmp.eq.s32.totalorder %s20, 0
    %p255 = por %p253, %p254
    %p256 = scmp.ne.s32.totalorder %s245, %s248
    %p257 = scmp.eq.s32.totalorder %s25, 1
    %p258 = por %p256, %p257
    %p259 = scmp.ne.s32.totalorder %s248, %s249
    %p260 = scmp.eq.s32.totalorder %s25, 0
    %p261 = por %p259, %p260
    %p262 = scmp.ne.s32.totalorder %s248, %s249
    %p263 = scmp.eq.s32.totalorder %s26, 1
    %p264 = por %p262, %p263
    %p266 = scmp.ne.s32.totalorder %s249, %s265
    %p267 = scmp.eq.s32.totalorder %s26, 0
    %p268 = por %p266, %p267
    %s269 = ssub.s32 %s28, %s35
    %p270 = scmp.eq.s32.totalorder %s269, 0
    %s272 = sadd.s32 %s271, 1
    %s273 = scalar_select %p270, %s271, %s272
    %p276 = pneg %p270
    %p277 = scmp.eq.s32.totalorder %s20, 1
    %p278 = por %p276, %p277
    %p279 = scmp.ne.s32.totalorder %s271, %s274
    %p280 = scmp.eq.s32.totalorder %s20, 0
    %p281 = por %p279, %p280
    %p282 = scmp.ne.s32.totalorder %s271, %s274
    %p283 = scmp.eq.s32.totalorder %s25, 1
    %p284 = por %p282, %p283
    %p285 = scmp.ne.s32.totalorder %s274, %s275
    %p286 = scmp.eq.s32.totalorder %s25, 0
    %p287 = por %p285, %p286
    %p288 = scmp.ne.s32.totalorder %s274, %s275
    %p289 = scmp.eq.s32.totalorder %s26, 1
    %p290 = por %p288, %p289
    %p292 = scmp.ne.s32.totalorder %s275, %s291
    %p293 = scmp.eq.s32.totalorder %s26, 0
    %p294 = por %p292, %p293
    %s295 = ssub.s32 %s28, %s35
    %p296 = scmp.eq.s32.totalorder %s295, 0
    %s298 = sadd.s32 %s297, 1
    %s299 = scalar_select %p296, %s297, %s298
    %p302 = pneg %p296
    %p303 = scmp.eq.s32.totalorder %s20, 1
    %p304 = por %p302, %p303
    %p305 = scmp.ne.s32.totalorder %s297, %s300
    %p306 = scmp.eq.s32.totalorder %s20, 0
    %p307 = por %p305, %p306
    %p308 = scmp.ne.s32.totalorder %s297, %s300
    %p309 = scmp.eq.s32.totalorder %s25, 1
    %p310 = por %p308, %p309
    %p311 = scmp.ne.s32.totalorder %s300, %s301
    %p312 = scmp.eq.s32.totalorder %s25, 0
    %p313 = por %p311, %p312
    %p314 = scmp.ne.s32.totalorder %s300, %s301
    %p315 = scmp.eq.s32.totalorder %s26, 1
    %p316 = por %p314, %p315
    %p318 = scmp.ne.s32.totalorder %s301, %s317
    %p319 = scmp.eq.s32.totalorder %s26, 0
    %p320 = por %p318, %p319
    %s321 = ssub.s32 %s28, %s35
    %p322 = scmp.eq.s32.totalorder %s321, 0
    %s324 = sadd.s32 %s323, 1
    %s325 = scalar_select %p322, %s323, %s324
    %p328 = pneg %p322
    %p329 = scmp.eq.s32.totalorder %s20, 1
    %p330 = por %p328, %p329
    %p331 = scmp.ne.s32.totalorder %s323, %s326
    %p332 = scmp.eq.s32.totalorder %s20, 0
    %p333 = por %p331, %p332
    %p334 = scmp.ne.s32.totalorder %s323, %s326
    %p335 = scmp.eq.s32.totalorder %s25, 1
    %p336 = por %p334, %p335
    %p337 = scmp.ne.s32.totalorder %s326, %s327
    %p338 = scmp.eq.s32.totalorder %s25, 0
    %p339 = por %p337, %p338
    %p340 = scmp.ne.s32.totalorder %s326, %s327
    %p341 = scmp.eq.s32.totalorder %s26, 1
    %p342 = por %p340, %p341
    %p344 = scmp.ne.s32.totalorder %s327, %s343
    %p345 = scmp.eq.s32.totalorder %s26, 0
    %p346 = por %p344, %p345
    %s347 = ssub.s32 %s28, %s35
    %p348 = scmp.eq.s32.totalorder %s347, 0
    %s350 = sadd.s32 %s349, 1
    %s351 = scalar_select %p348, %s349, %s350
    %p354 = pneg %p348
    %p355 = scmp.eq.s32.totalorder %s20, 1
    %p356 = por %p354, %p355
    %p357 = scmp.ne.s32.totalorder %s349, %s352
    %p358 = scmp.eq.s32.totalorder %s20, 0
    %p359 = por %p357, %p358
    %p360 = scmp.ne.s32.totalorder %s349, %s352
    %p361 = scmp.eq.s32.totalorder %s25, 1
    %p362 = por %p360, %p361
    %p363 = scmp.ne.s32.totalorder %s352, %s353
    %p364 = scmp.eq.s32.totalorder %s25, 0
    %p365 = por %p363, %p364
    %p366 = scmp.ne.s32.totalorder %s352, %s353
    %p367 = scmp.eq.s32.totalorder %s26, 1
    %p368 = por %p366, %p367
    %p370 = scmp.ne.s32.totalorder %s353, %s369
    %p371 = scmp.eq.s32.totalorder %s26, 0
    %p372 = por %p370, %p371
    %s373 = ssub.s32 %s28, %s35
    %p374 = scmp.eq.s32.totalorder %s373, 0
    %s376 = sadd.s32 %s375, 1
    %s377 = scalar_select %p374, %s375, %s376
    %p380 = pneg %p374
    %p381 = scmp.eq.s32.totalorder %s20, 1
    %p382 = por %p380, %p381
    %p383 = scmp.ne.s32.totalorder %s375, %s378
    %p384 = scmp.eq.s32.totalorder %s20, 0
    %p385 = por %p383, %p384
    %p386 = scmp.ne.s32.totalorder %s375, %s378
    %p387 = scmp.eq.s32.totalorder %s25, 1
    %p388 = por %p386, %p387
    %p389 = scmp.ne.s32.totalorder %s378, %s379
    %p390 = scmp.eq.s32.totalorder %s25, 0
    %p391 = por %p389, %p390
    %p392 = scmp.ne.s32.totalorder %s378, %s379
    %p393 = scmp.eq.s32.totalorder %s26, 1
    %p394 = por %p392, %p393
    %p396 = scmp.ne.s32.totalorder %s379, %s395
    %p397 = scmp.eq.s32.totalorder %s26, 0
    %p398 = por %p396, %p397
    %s399 = ssub.s32 %s27, %s39
    %p400 = scmp.eq.s32.totalorder %s399, 0
    %s402 = sadd.s32 %s401, 1
    %s403 = scalar_select %p400, %s401, %s402
    %p406 = pneg %p400
    %p407 = scmp.eq.s32.totalorder %s20, 1
    %p408 = por %p406, %p407
    %p409 = scmp.ne.s32.totalorder %s401, %s404
    %p410 = scmp.eq.s32.totalorder %s20, 0
    %p411 = por %p409, %p410
    %p412 = scmp.ne.s32.totalorder %s401, %s404
    %p413 = scmp.eq.s32.totalorder %s25, 1
    %p414 = por %p412, %p413
    %p415 = scmp.ne.s32.totalorder %s404, %s405
    %p416 = scmp.eq.s32.totalorder %s25, 0
    %p417 = por %p415, %p416
    %p418 = scmp.ne.s32.totalorder %s404, %s405
    %p419 = scmp.eq.s32.totalorder %s26, 1
    %p420 = por %p418, %p419
    %p422 = scmp.ne.s32.totalorder %s405, %s421
    %p423 = scmp.eq.s32.totalorder %s26, 0
    %p424 = por %p422, %p423
    %p425 = scmp.le.s32.totalorder 1, %s20
    %p426 = scmp.lt.s32.totalorder %s20, 3
    %p427 = pnand %p425, %p426
    %p428 = pneg %p427
    // Predicated region
    $region9: #{gpt2_model.2} parent=5 // pred_check
      _
    $region10: #{gpt2_model.2} parent=5 // pred_check_branch
      %430 = sbr.rel (%p427) target = $region12
    $region11: #{gpt2_model.2} parent=5 // pred_region
      %s431 = ssub.s32 %s20, 1
      // Predicated region
      $region13: #{gpt2_model.2} parent=11 // pred_check
        %p432 = pneg %p58
      $region14: #{gpt2_model.2} parent=11 // pred_check_branch
        %434 = sbr.rel (%p432) target = $region16
      $region15: #{gpt2_model.2} parent=11 // pred_region
        %p435 = scmp.lt.s32.totalorder %s29, 0
        %s436 = scalar_select %p435, %s29, 0
        %s437 = smul.addr %s436, 2
        %s438 = smul.addr %s437, 8
        %s439 = scalar_lea.vmem %s0, %s438
      $region16: #{gpt2_model.2} parent=11 // pred_fallthru
        _
      // Predicated region
      $region17: #{gpt2_model.2} parent=11 // pred_check
        %p440 = pneg %p79
      $region18: #{gpt2_model.2} parent=11 // pred_check_branch
        %442 = sbr.rel (%p440) target = $region20
      $region19: #{gpt2_model.2} parent=11 // pred_region
        _
      $region20: #{gpt2_model.2} parent=11 // pred_fallthru
        _
    $region12: #{gpt2_model.2} parent=5 // pred_fallthru
      _
    %p443 = scmp.lt.s32.totalorder %s20, 2
    // Predicated region
    $region21: #{gpt2_model.2} parent=5 // pred_check
      %p444 = pneg %p443
    $region22: #{gpt2_model.2} parent=5 // pred_check_branch
      %446 = sbr.rel (%p444) target = $region24
    $region23: #{gpt2_model.2} parent=5 // pred_region
      // Predicated region
      $region25: #{gpt2_model.2} parent=23 // pred_check
        %p447 = pneg %p99
      $region26: #{gpt2_model.2} parent=23 // pred_check_branch
        %449 = sbr.rel (%p447) target = $region28
      $region27: #{gpt2_model.2} parent=23 // pred_region
        %p450 = scmp.lt.s32.totalorder %s28, 1
        %s451 = scalar_select %p450, %s28, 1
        %s452 = scalar_lea.vmem %s2, %s451
      $region28: #{gpt2_model.2} parent=23 // pred_fallthru
        _
      // Predicated region
      $region29: #{gpt2_model.2} parent=23 // pred_check
        %p453 = pneg %p125
      $region30: #{gpt2_model.2} parent=23 // pred_check_branch
        %455 = sbr.rel (%p453) target = $region32
      $region31: #{gpt2_model.2} parent=23 // pred_region
        %p456 = scmp.lt.s32.totalorder %s28, 1
        %s457 = scalar_select %p456, %s28, 1
        %s458 = scalar_lea.vmem %s3, %s457
      $region32: #{gpt2_model.2} parent=23 // pred_fallthru
        _
      // Predicated region
      $region33: #{gpt2_model.2} parent=23 // pred_check
        %p459 = pneg %p151
      $region34: #{gpt2_model.2} parent=23 // pred_check_branch
        %461 = sbr.rel (%p459) target = $region36
      $region35: #{gpt2_model.2} parent=23 // pred_region
        %p462 = scmp.lt.s32.totalorder %s28, 1
        %s463 = scalar_select %p462, %s28, 1
        %s464 = smul.addr %s463, 48
        %s465 = smul.addr %s464, 4
        %s466 = scalar_lea.vmem %s4, %s465
      $region36: #{gpt2_model.2} parent=23 // pred_fallthru
        _
      // Predicated region
      $region37: #{gpt2_model.2} parent=23 // pred_check
        %p467 = pneg %p177
      $region38: #{gpt2_model.2} parent=23 // pred_check_branch
        %469 = sbr.rel (%p467) target = $region40
      $region39: #{gpt2_model.2} parent=23 // pred_region
        %p470 = scmp.lt.s32.totalorder %s28, 1
        %s471 = scalar_select %p470, %s28, 1
        %s472 = smul.addr %s471, 3
        %s473 = scalar_lea.vmem %s5, %s472
      $region40: #{gpt2_model.2} parent=23 // pred_fallthru
        _
      // Predicated region
      $region41: #{gpt2_model.2} parent=23 // pred_check
        %p474 = pneg %p203
      $region42: #{gpt2_model.2} parent=23 // pred_check_branch
        %476 = sbr.rel (%p474) target = $region44
      $region43: #{gpt2_model.2} parent=23 // pred_region
        %p477 = scmp.lt.s32.totalorder %s28, 1
        %s478 = scalar_select %p477, %s28, 1
        %s479 = smul.addr %s478, 16
        %s480 = smul.addr %s479, 4
        %s481 = scalar_lea.vmem %s6, %s480
      $region44: #{gpt2_model.2} parent=23 // pred_fallthru
        _
      // Predicated region
      $region45: #{gpt2_model.2} parent=23 // pred_check
        %p482 = pneg %p229
      $region46: #{gpt2_model.2} parent=23 // pred_check_branch
        %484 = sbr.rel (%p482) target = $region48
      $region47: #{gpt2_model.2} parent=23 // pred_region
        %p485 = scmp.lt.s32.totalorder %s28, 1
        %s486 = scalar_select %p485, %s28, 1
        %s487 = scalar_lea.vmem %s7, %s486
      $region48: #{gpt2_model.2} parent=23 // pred_fallthru
        _
      // Predicated region
      $region49: #{gpt2_model.2} parent=23 // pred_check
        %p488 = pneg %p255
      $region50: #{gpt2_model.2} parent=23 // pred_check_branch
        %490 = sbr.rel (%p488) target = $region52
      $region51: #{gpt2_model.2} parent=23 // pred_region
        %p491 = scmp.lt.s32.totalorder %s28, 1
        %s492 = scalar_select %p491, %s28, 1
        %s493 = scalar_lea.vmem %s8, %s492
      $region52: #{gpt2_model.2} parent=23 // pred_fallthru
        _
      // Predicated region
      $region53: #{gpt2_model.2} parent=23 // pred_check
        %p494 = pneg %p281
      $region54: #{gpt2_model.2} parent=23 // pred_check_branch
        %496 = sbr.rel (%p494) target = $region56
      $region55: #{gpt2_model.2} parent=23 // pred_region
        %p497 = scmp.lt.s32.totalorder %s28, 1
        %s498 = scalar_select %p497, %s28, 1
        %s499 = scalar_lea.vmem %s9, %s498
      $region56: #{gpt2_model.2} parent=23 // pred_fallthru
        _
      // Predicated region
      $region57: #{gpt2_model.2} parent=23 // pred_check
        %p500 = pneg %p307
      $region58: #{gpt2_model.2} parent=23 // pred_check_branch
        %502 = sbr.rel (%p500) target = $region60
      $region59: #{gpt2_model.2} parent=23 // pred_region
        %p503 = scmp.lt.s32.totalorder %s28, 1
        %s504 = scalar_select %p503, %s28, 1
        %s505 = smul.addr %s504, 64
        %s506 = smul.addr %s505, 4
        %s507 = scalar_lea.vmem %s10, %s506
      $region60: #{gpt2_model.2} parent=23 // pred_fallthru
        _
      // Predicated region
      $region61: #{gpt2_model.2} parent=23 // pred_check
        %p508 = pneg %p333
      $region62: #{gpt2_model.2} parent=23 // pred_check_branch
        %510 = sbr.rel (%p508) target = $region64
      $region63: #{gpt2_model.2} parent=23 // pred_region
        %p511 = scmp.lt.s32.totalorder %s28, 1
        %s512 = scalar_select %p511, %s28, 1
        %s513 = smul.addr %s512, 4
        %s514 = scalar_lea.vmem %s11, %s513
      $region64: #{gpt2_model.2} parent=23 // pred_fallthru
        _
      // Predicated region
      $region65: #{gpt2_model.2} parent=23 // pred_check
        %p515 = pneg %p359
      $region66: #{gpt2_model.2} parent=23 // pred_check_branch
        %517 = sbr.rel (%p515) target = $region68
      $region67: #{gpt2_model.2} parent=23 // pred_region
        %p518 = scmp.lt.s32.totalorder %s28, 1
        %s519 = scalar_select %p518, %s28, 1
        %s520 = smul.addr %s519, 64
        %s521 = smul.addr %s520, 4
        %s522 = scalar_lea.vmem %s12, %s521
      $region68: #{gpt2_model.2} parent=23 // pred_fallthru
        _
      // Predicated region
      $region69: #{gpt2_model.2} parent=23 // pred_check
        %p523 = pneg %p385
      $region70: #{gpt2_model.2} parent=23 // pred_check_branch
        %525 = sbr.rel (%p523) target = $region72
      $region71: #{gpt2_model.2} parent=23 // pred_region
        %p526 = scmp.lt.s32.totalorder %s28, 1
        %s527 = scalar_select %p526, %s28, 1
        %s528 = scalar_lea.vmem %s13, %s527
      $region72: #{gpt2_model.2} parent=23 // pred_fallthru
        _
    $region24: #{gpt2_model.2} parent=5 // pred_fallthru
      _
    %p529 = scmp.le.s32.totalorder 1, %s20
    %p530 = scmp.lt.s32.totalorder %s20, 3
    %p531 = pnand %p529, %p530
    %p532 = pneg %p531
    // Predicated region
    $region73: #{gpt2_model.2} parent=5 // pred_check
      _
    $region74: #{gpt2_model.2} parent=5 // pred_check_branch
      %534 = sbr.rel (%p531) target = $region76
    $region75: #{gpt2_model.2} parent=5 // pred_region
      %s535 = ssub.s32 %s20, 1
      %p536 = scmp.lt.s32.totalorder %s29, 0
      %s537 = scalar_select %p536, %s29, 0
      %s538 = smul.addr %s537, 2
      %s539 = smul.addr %s538, 8
      %s540 = scalar_lea.vmem %s0, %s539
      %p541 = pneg %p58
      %p542 = pneg %p55
      %p543 = pneg %p79
      %p544 = pneg %p76
      %p545 = scmp.lt.s32.totalorder %s30, 1
      %s546 = scalar_select %p545, %s30, 1
      %s547 = scalar_lea.vmem %s2, %s546
      %p548 = pneg %p105
      %p549 = pneg %p102
      %p550 = scmp.lt.s32.totalorder %s30, 1
      %s551 = scalar_select %p550, %s30, 1
      %s552 = scalar_lea.vmem %s3, %s551
      %p553 = pneg %p131
      %p554 = pneg %p128
      %p555 = scmp.lt.s32.totalorder %s30, 1
      %s556 = scalar_select %p555, %s30, 1
      %s557 = smul.addr %s556, 48
      %s558 = smul.addr %s557, 4
      %s559 = scalar_lea.vmem %s4, %s558
      %p560 = pneg %p157
      %p561 = pneg %p154
      %p562 = scmp.lt.s32.totalorder %s30, 1
      %s563 = scalar_select %p562, %s30, 1
      %s564 = smul.addr %s563, 3
      %s565 = scalar_lea.vmem %s5, %s564
      %p566 = pneg %p183
      %p567 = pneg %p180
      %p568 = scmp.lt.s32.totalorder %s30, 1
      %s569 = scalar_select %p568, %s30, 1
      %s570 = smul.addr %s569, 16
      %s571 = smul.addr %s570, 4
      %s572 = scalar_lea.vmem %s6, %s571
      %p573 = pneg %p209
      %p574 = pneg %p206
      %p575 = scmp.lt.s32.totalorder %s30, 1
      %s576 = scalar_select %p575, %s30, 1
      %s577 = scalar_lea.vmem %s7, %s576
      %p578 = pneg %p235
      %p579 = pneg %p232
      %p580 = scmp.lt.s32.totalorder %s30, 1
      %s581 = scalar_select %p580, %s30, 1
      %s582 = scalar_lea.vmem %s8, %s581
      %p583 = pneg %p261
      %p584 = pneg %p258
      %p585 = scmp.lt.s32.totalorder %s30, 1
      %s586 = scalar_select %p585, %s30, 1
      %s587 = scalar_lea.vmem %s9, %s586
      %p588 = pneg %p287
      %p589 = pneg %p284
      %p590 = scmp.lt.s32.totalorder %s30, 1
      %s591 = scalar_select %p590, %s30, 1
      %s592 = smul.addr %s591, 64
      %s593 = smul.addr %s592, 4
      %s594 = scalar_lea.vmem %s10, %s593
      %p595 = pneg %p313
      %p596 = pneg %p310
      %p597 = scmp.lt.s32.totalorder %s30, 1
      %s598 = scalar_select %p597, %s30, 1
      %s599 = smul.addr %s598, 4
      %s600 = scalar_lea.vmem %s11, %s599
      %p601 = pneg %p339
      %p602 = pneg %p336
      %p603 = scmp.lt.s32.totalorder %s30, 1
      %s604 = scalar_select %p603, %s30, 1
      %s605 = smul.addr %s604, 64
      %s606 = smul.addr %s605, 4
      %s607 = scalar_lea.vmem %s12, %s606
      %p608 = pneg %p365
      %p609 = pneg %p362
      %p610 = scmp.lt.s32.totalorder %s30, 1
      %s611 = scalar_select %p610, %s30, 1
      %s612 = scalar_lea.vmem %s13, %s611
      %p613 = pneg %p391
      %p614 = pneg %p388
      %p615 = pneg %p417
      %p616 = pneg %p414
      %p617 = scmp.lt.s32.totalorder %s29, 0
      %s618 = scalar_select %p617, %s29, 0
      %s619 = smul.addr %s618, 2
      %s620 = smul.addr %s619, 8
      %s621 = scalar_lea.vmem %s14, %s620
      %p622 = scmp.lt.s32.totalorder %s29, 0
      %s623 = scalar_select %p622, %s29, 0
      %s624 = smul.addr %s623, 2
      %s625 = smul.addr %s624, 8
      %s626 = scalar_lea.vmem %s0, %s625
      %p627 = scmp.lt.s32.totalorder %s30, 1
      %s628 = scalar_select %p627, %s30, 1
      %s629 = scalar_lea.vmem %s2, %s628
      %p630 = scmp.lt.s32.totalorder %s30, 1
      %s631 = scalar_select %p630, %s30, 1
      %s632 = scalar_lea.vmem %s3, %s631
      %p633 = scmp.lt.s32.totalorder %s30, 1
      %s634 = scalar_select %p633, %s30, 1
      %s635 = smul.addr %s634, 48
      %s636 = smul.addr %s635, 4
      %s637 = scalar_lea.vmem %s4, %s636
      %p638 = scmp.lt.s32.totalorder %s30, 1
      %s639 = scalar_select %p638, %s30, 1
      %s640 = smul.addr %s639, 3
      %s641 = scalar_lea.vmem %s5, %s640
      %p642 = scmp.lt.s32.totalorder %s30, 1
      %s643 = scalar_select %p642, %s30, 1
      %s644 = smul.addr %s643, 16
      %s645 = smul.addr %s644, 4
      %s646 = scalar_lea.vmem %s6, %s645
      %p647 = scmp.lt.s32.totalorder %s30, 1
      %s648 = scalar_select %p647, %s30, 1
      %s649 = scalar_lea.vmem %s7, %s648
      %p650 = scmp.lt.s32.totalorder %s30, 1
      %s651 = scalar_select %p650, %s30, 1
      %s652 = scalar_lea.vmem %s8, %s651
      %p653 = scmp.lt.s32.totalorder %s30, 1
      %s654 = scalar_select %p653, %s30, 1
      %s655 = scalar_lea.vmem %s9, %s654
      %p656 = scmp.lt.s32.totalorder %s30, 1
      %s657 = scalar_select %p656, %s30, 1
      %s658 = smul.addr %s657, 64
      %s659 = smul.addr %s658, 4
      %s660 = scalar_lea.vmem %s10, %s659
      %p661 = scmp.lt.s32.totalorder %s30, 1
      %s662 = scalar_select %p661, %s30, 1
      %s663 = smul.addr %s662, 4
      %s664 = scalar_lea.vmem %s11, %s663
      %p665 = scmp.lt.s32.totalorder %s30, 1
      %s666 = scalar_select %p665, %s30, 1
      %s667 = smul.addr %s666, 64
      %s668 = smul.addr %s667, 4
      %s669 = scalar_lea.vmem %s12, %s668
      %p670 = scmp.lt.s32.totalorder %s30, 1
      %s671 = scalar_select %p670, %s30, 1
      %s672 = scalar_lea.vmem %s13, %s671
      %p673 = scmp.lt.s32.totalorder %s29, 0
      %s674 = scalar_select %p673, %s29, 0
      %s675 = smul.addr %s674, 2
      %s676 = smul.addr %s675, 8
      %s677 = scalar_lea.vmem %s14, %s676
      %p679 = scmp.eq.s32.totalorder %s30, 0
      // Predicated region
      $region77: #{gpt2_model.2} parent=75 // pred_check
        %p680 = pneg %p679
      $region78: #{gpt2_model.2} parent=75 // pred_check_branch
        %682 = sbr.rel (%p680) target = $region80
      $region79: #{gpt2_model.2} parent=75 // pred_region
        %v683 = vld [vmem:[%s626] sm:$0xff]
        %v684 = vld [vmem:[%s626 + $0x8] sm:$0xff]
        %685 = vst [vmem:[%s677] sm:$0xff] %v683
        %686 = vst [vmem:[%s677 + $0x8] sm:$0xff] %v684
      $region80: #{gpt2_model.2} parent=75 // pred_fallthru
        _
      %v687 = vld [vmem:[%s677] sm:$0xff]
      %v688 = vld [vmem:[%s677 + $0x8] sm:$0xff]
      %v689 = vld [vmem:[%s1] sm:$0xff]
      %v690 = vld [vmem:[%s1 + $0x8] sm:$0xff]
      %v691 = vld [vmem:[%s629] sm:$0x1]
      %v692 = vld [vmem:[%s632] sm:$0x1]
      %693 = vadd.xlane.f32.xlu0 %v687
      %v694 = vpop.xlane.xlu0 %693
      %695 = vadd.xlane.f32.xlu0 %v688
      %v696 = vpop.xlane.xlu0 %695
      %v697 = vrcp.pop 128.0
      %v698 = vmul.f32 128.0, %v697
      %v699 = vsub.f32 1.0, %v698
      %v700 = vmul.f32 %v697, %v699
      %v701 = vadd.f32 %v697, %v700
      %vm702 = vweird.f32 %v697
      %v703 = vsel %vm702, %v697, %v701
      %v704 = vmul.f32 %v694, %v703
      %v705 = vmul.f32 %v696, %v703
      %v706 = vsub.f32 %v687, %v704
      %v707 = vsub.f32 %v688, %v705
      %v708 = vmul.f32 %v706, %v706
      %v709 = vmul.f32 %v707, %v707
      %710 = vadd.xlane.f32.xlu0 %v708
      %v711 = vpop.xlane.xlu0 %710
      %712 = vadd.xlane.f32.xlu0 %v709
      %v713 = vpop.xlane.xlu0 %712
      %v714 = vmul.f32 %v711, %v703
      %v715 = vmul.f32 %v713, %v703
      %v716 = vadd.f32 %v714, 1e-05
      %v717 = vadd.f32 %v715, 1e-05
      %v718 = vrsqrt.pop %v716
      %v719 = vmul.f32 %v718, %v716
      %v720 = vmul.f32 %v719, %v718
      %v721 = vmul.f32 0.5, %v720
      %v722 = vsub.f32 1.5, %v721
      %v723 = vmul.f32 %v718, %v722
      %vm724 = vweird.f32 %v716
      %vm725 = vweird.f32 %v718
      %vm726 = vmor %vm724, %vm725
      %v727 = vsel %vm726, %v718, %v723
      %v728 = vrsqrt.pop %v717
      %v729 = vmul.f32 %v728, %v717
      %v730 = vmul.f32 %v729, %v728
      %v731 = vmul.f32 0.5, %v730
      %v732 = vsub.f32 1.5, %v731
      %v733 = vmul.f32 %v728, %v732
      %vm734 = vweird.f32 %v717
      %vm735 = vweird.f32 %v728
      %vm736 = vmor %vm734, %vm735
      %v737 = vsel %vm736, %v728, %v733
      %v738 = vmul.f32 %v706, %v727
      %v739 = vmul.f32 %v707, %v737
      %v741 = vperm.slane %v691, 0
      %v743 = vmul.f32 %v738, %v741
      %v744 = vmul.f32 %v739, %v741
      %v746 = vperm.slane %v692, 0
      %v748 = vadd.f32 %v743, %v746
      %v749 = vadd.f32 %v744, %v746
      %v750 = vpack.c.bf16 %v749, %v748
      %v751 = vld [vmem:[%s637] sm:$0xff]
      %v752 = vld [vmem:[%s637 + $0x8] sm:$0xf]
      %v753 = vld [vmem:[%s637 + $0xc] sm:$0xff]
      %v754 = vld [vmem:[%s637 + $0x14] sm:$0xf]
      %v755 = vld [vmem:[%s637 + $0x18] sm:$0xff]
      %v756 = vld [vmem:[%s637 + $0x20] sm:$0xf]
      %v757 = vld [vmem:[%s637 + $0x24] sm:$0xff]
      %v758 = vld [vmem:[%s637 + $0x2c] sm:$0xf]
      %v759 = vld [vmem:[%s637 + $0x30] sm:$0xff]
      %v760 = vld [vmem:[%s637 + $0x38] sm:$0xf]
      %v761 = vld [vmem:[%s637 + $0x3c] sm:$0xff]
      %v762 = vld [vmem:[%s637 + $0x44] sm:$0xf]
      %v763 = vld [vmem:[%s637 + $0x48] sm:$0xff]
      %v764 = vld [vmem:[%s637 + $0x50] sm:$0xf]
      %v765 = vld [vmem:[%s637 + $0x54] sm:$0xff]
      %v766 = vld [vmem:[%s637 + $0x5c] sm:$0xf]
      %v767 = vld [vmem:[%s637 + $0x60] sm:$0xff]
      %v768 = vld [vmem:[%s637 + $0x68] sm:$0xf]
      %v769 = vld [vmem:[%s637 + $0x6c] sm:$0xff]
      %v770 = vld [vmem:[%s637 + $0x74] sm:$0xf]
      %v771 = vld [vmem:[%s637 + $0x78] sm:$0xff]
      %v772 = vld [vmem:[%s637 + $0x80] sm:$0xf]
      %v773 = vld [vmem:[%s637 + $0x84] sm:$0xff]
      %v774 = vld [vmem:[%s637 + $0x8c] sm:$0xf]
      %v775 = vld [vmem:[%s637 + $0x90] sm:$0xff]
      %v776 = vld [vmem:[%s637 + $0x98] sm:$0xf]
      %v777 = vld [vmem:[%s637 + $0x9c] sm:$0xff]
      %v778 = vld [vmem:[%s637 + $0xa4] sm:$0xf]
      %v779 = vld [vmem:[%s637 + $0xa8] sm:$0xff]
      %v780 = vld [vmem:[%s637 + $0xb0] sm:$0xf]
      %v781 = vld [vmem:[%s637 + $0xb4] sm:$0xff]
      %v782 = vld [vmem:[%s637 + $0xbc] sm:$0xf]
      %v783 = vld [vmem:[%s641] sm:$0x7]
      %v785 = vperm.slane %v783, 0
      %v786 = vperm.slane %v783, 1
      %v787 = vperm.slane %v783, 2
      %v823 = vunpack.c.l.b16 %v751
      %v824 = vunpack.c.h.b16 %v751
      %v825 = vunpack.c.l.b16 %v752
      %v826 = vunpack.c.l.b16 %v753
      %v827 = vunpack.c.h.b16 %v753
      %v828 = vunpack.c.l.b16 %v754
      %v829 = vunpack.c.l.b16 %v755
      %v830 = vunpack.c.h.b16 %v755
      %v831 = vunpack.c.l.b16 %v756
      %v832 = vunpack.c.l.b16 %v757
      %v833 = vunpack.c.h.b16 %v757
      %v834 = vunpack.c.l.b16 %v758
      %v835 = vunpack.c.l.b16 %v759
      %v836 = vunpack.c.h.b16 %v759
      %v837 = vunpack.c.l.b16 %v760
      %v838 = vunpack.c.l.b16 %v761
      %v839 = vunpack.c.h.b16 %v761
      %v840 = vunpack.c.l.b16 %v762
      %v841 = vunpack.c.l.b16 %v763
      %v842 = vunpack.c.h.b16 %v763
      %v843 = vunpack.c.l.b16 %v764
      %v844 = vunpack.c.l.b16 %v765
      %v845 = vunpack.c.h.b16 %v765
      %v846 = vunpack.c.l.b16 %v766
      %v847 = vunpack.c.l.b16 %v767
      %v848 = vunpack.c.h.b16 %v767
      %v849 = vunpack.c.l.b16 %v768
      %v850 = vunpack.c.l.b16 %v769
      %v851 = vunpack.c.h.b16 %v769
      %v852 = vunpack.c.l.b16 %v770
      %v853 = vunpack.c.l.b16 %v771
      %v854 = vunpack.c.h.b16 %v771
      %v855 = vunpack.c.l.b16 %v772
      %v856 = vunpack.c.l.b16 %v773
      %v857 = vunpack.c.h.b16 %v773
      %v858 = vunpack.c.l.b16 %v774
      %v859 = vunpack.c.l.b16 %v775
      %v860 = vunpack.c.h.b16 %v775
      %v861 = vunpack.c.l.b16 %v776
      %v862 = vunpack.c.l.b16 %v777
      %v863 = vunpack.c.h.b16 %v777
      %v864 = vunpack.c.l.b16 %v778
      %v865 = vunpack.c.l.b16 %v779
      %v866 = vunpack.c.h.b16 %v779
      %v867 = vunpack.c.l.b16 %v780
      %v868 = vunpack.c.l.b16 %v781
      %v869 = vunpack.c.h.b16 %v781
      %v870 = vunpack.c.l.b16 %v782
      %v871 = vpack.c.b16 %v826, %v823
      %v872 = vpack.c.b16 %v827, %v824
      %v873 = vpack.c.b16 %v828, %v825
      %v874 = vpack.c.b16 %v832, %v829
      %v875 = vpack.c.b16 %v833, %v830
      %v876 = vpack.c.b16 %v834, %v831
      %v877 = vpack.c.b16 %v838, %v835
      %v878 = vpack.c.b16 %v839, %v836
      %v879 = vpack.c.b16 %v840, %v837
      %v880 = vpack.c.b16 %v844, %v841
      %v881 = vpack.c.b16 %v845, %v842
      %v882 = vpack.c.b16 %v846, %v843
      %v883 = vpack.c.b16 %v850, %v847
      %v884 = vpack.c.b16 %v851, %v848
      %v885 = vpack.c.b16 %v852, %v849
      %v886 = vpack.c.b16 %v856, %v853
      %v887 = vpack.c.b16 %v857, %v854
      %v888 = vpack.c.b16 %v858, %v855
      %v889 = vpack.c.b16 %v862, %v859
      %v890 = vpack.c.b16 %v863, %v860
      %v891 = vpack.c.b16 %v864, %v861
      %v892 = vpack.c.b16 %v868, %v865
      %v893 = vpack.c.b16 %v869, %v866
      %v894 = vpack.c.b16 %v870, %v867
      %919 = vmatpush.bf16.msra.mxu0 %v892
      %920 = vmatpush.bf16.msra.mxu0 %v889
      %921 = vmatpush.bf16.msra.mxu0 %v886
      %922 = vmatpush.bf16.msra.mxu0 %v883
      %923 = vmatpush.bf16.msra.mxu0 %v880
      %924 = vmatpush.bf16.msra.mxu0 %v877
      %925 = vmatpush.bf16.msra.mxu0 %v874
      %926 = vmatpush.bf16.msra.mxu0 %v871
      %927 = vmatmul.bf16.gmra.mxu0 %v750
      %v928 = vpop.f32.mrf.mxu0
      %v929 = vadd.f32 %v785, %v928
      %v930 = vpop.f32.mrf.mxu0
      %v931 = vadd.f32 %v785, %v930
      %932 = vdwg.mxu0
      %933 = vmatpush.bf16.msra.mxu0 %v893
      %934 = vmatpush.bf16.msra.mxu0 %v890
      %935 = vmatpush.bf16.msra.mxu0 %v887
      %936 = vmatpush.bf16.msra.mxu0 %v884
      %937 = vmatpush.bf16.msra.mxu0 %v881
      %938 = vmatpush.bf16.msra.mxu0 %v878
      %939 = vmatpush.bf16.msra.mxu0 %v875
      %940 = vmatpush.bf16.msra.mxu0 %v872
      %941 = vmatmul.bf16.gmra.mxu0 %v750
      %v942 = vpop.f32.mrf.mxu0
      %v943 = vadd.f32 %v786, %v942
      %v944 = vpop.f32.mrf.mxu0
      %v945 = vadd.f32 %v786, %v944
      %946 = vdwg.mxu0
      %947 = vmatpush.bf16.msra.mxu0 %v894
      %948 = vmatpush.bf16.msra.mxu0 %v891
      %949 = vmatpush.bf16.msra.mxu0 %v888
      %950 = vmatpush.bf16.msra.mxu0 %v885
      %951 = vmatpush.bf16.msra.mxu0 %v882
      %952 = vmatpush.bf16.msra.mxu0 %v879
      %953 = vmatpush.bf16.msra.mxu0 %v876
      %954 = vmatpush.bf16.msra.mxu0 %v873
      %955 = vmatmul.bf16.gmra.mxu0 %v750
      %v956 = vpop.f32.mrf.mxu0
      %v957 = vadd.f32 %v787, %v956
      %v958 = vpop.f32.mrf.mxu0
      %v959 = vadd.f32 %v787, %v958
      %960 = vdwg.mxu0
      %v961 = vpack.c.bf16 %v929, %v929
      %v962 = vpack.c.bf16 %v931, %v931
      %v963 = vpack.c.bf16 %v943, %v943
      %v964 = vpack.c.bf16 %v945, %v945
      %v965 = vpack.c.bf16 %v957, %v957
      %v966 = vpack.c.bf16 %v959, %v959
      %v969 = vunpack.c.l.b16 %v961
      %v970 = vunpack.c.l.b16 %v962
      %v971 = vpack.c.b16 %v970, %v969
      %v974 = vunpack.c.l.b16 %v963
      %v975 = vunpack.c.l.b16 %v964
      %v976 = vpack.c.b16 %v975, %v974
      %vm977 = vcmask 261120
      %v979 = vsel %vm977, %v971, 0
      %v982 = vsel %vm977, %v976, 0
      %984 = vmatpush.bf16.xpose.msra.mxu0 0
      %985 = vmatpush.bf16.xpose.msra.mxu0 0
      %986 = vmatpush.bf16.xpose.msra.mxu0 0
      %987 = vmatpush.bf16.xpose.msra.mxu0 0
      %988 = vmatpush.bf16.xpose.msra.mxu0 0
      %989 = vmatpush.bf16.xpose.msra.mxu0 0
      %990 = vmatpush.bf16.xpose.msra.mxu0 0
      %991 = vmatpush.bf16.xpose.msra.mxu0 %v982
      %992 = vmatmul.bf16.gmra.mxu0 %v979
      %v993 = vpop.f32.mrf.mxu0
      %v994 = vadd.f32 %v689, %v993
      %v995 = vpop.f32.mrf.mxu0
      %v996 = vadd.f32 %v690, %v995
      %997 = vdwg.mxu0
      %vm998 = vcmask 130048
      %v999 = vsel %vm998, %v994, -inf
      %1000 = vmax.xlane.f32.xlu0 %v999
      %v1001 = vpop.xlane.xlu0 %1000
      %v1002 = vsel %vm998, %v996, -inf
      %1003 = vmax.xlane.f32.xlu0 %v1002
      %v1004 = vpop.xlane.xlu0 %1003
      %v1005 = vsub.f32 %v994, %v1001
      %v1006 = vsub.f32 %v996, %v1004
      %v1007 = vmul.f32 %v1005, 1.442695
      %v1008 = vpow.pop %v1007
      %v1009 = vmul.f32 %v1006, 1.442695
      %v1010 = vpow.pop %v1009
      %v1011 = vsel %vm998, %v1008, 0.0
      %1012 = vadd.xlane.f32.xlu0 %v1011
      %v1013 = vpop.xlane.xlu0 %1012
      %v1014 = vsel %vm998, %v1010, 0.0
      %1015 = vadd.xlane.f32.xlu0 %v1014
      %v1016 = vpop.xlane.xlu0 %1015
      %v1017 = vrcp.pop %v1013
      %v1018 = vrcp.pop %v1016
      %v1019 = vmul.f32 %v1008, %v1017
      %v1020 = vmul.f32 %v1010, %v1018
      %v1021 = vpack.c.bf16 %v1020, %v1019
      %v1024 = vunpack.c.l.b16 %v965
      %v1025 = vunpack.c.l.b16 %v966
      %v1026 = vpack.c.b16 %v1025, %v1024
      %v1029 = vsel %vm998, %v1021, 0
      %1031 = vmatpush.bf16.msra.mxu0 0
      %1032 = vmatpush.bf16.msra.mxu0 0
      %1033 = vmatpush.bf16.msra.mxu0 0
      %1034 = vmatpush.bf16.msra.mxu0 0
      %1035 = vmatpush.bf16.msra.mxu0 0
      %1036 = vmatpush.bf16.msra.mxu0 0
      %1037 = vmatpush.bf16.msra.mxu0 0
      %1038 = vmatpush.bf16.msra.mxu0 %v1026
      %1039 = vmatmul.bf16.gmra.mxu0 %v1029
      %v1040 = vpop.f32.mrf.mxu0
      %v1041 = vadd.f32 0.0, %v1040
      %v1042 = vpop.f32.mrf.mxu0
      %v1043 = vadd.f32 0.0, %v1042
      %1044 = vdwg.mxu0
      %1045 = vrot.lane.b32.xlu0 %v971, 96
      %v1046 = vpop.permute.xlu0 %1045
      %1047 = vrot.lane.b32.xlu0 %v976, 96
      %v1048 = vpop.permute.xlu0 %1047
      %v1050 = vsel %vm977, %v1046, 0
      %v1053 = vsel %vm977, %v1048, 0
      %1055 = vmatpush.bf16.xpose.msra.mxu0 0
      %1056 = vmatpush.bf16.xpose.msra.mxu0 0
      %1057 = vmatpush.bf16.xpose.msra.mxu0 0
      %1058 = vmatpush.bf16.xpose.msra.mxu0 0
      %1059 = vmatpush.bf16.xpose.msra.mxu0 0
      %1060 = vmatpush.bf16.xpose.msra.mxu0 0
      %1061 = vmatpush.bf16.xpose.msra.mxu0 0
      %1062 = vmatpush.bf16.xpose.msra.mxu0 %v1053
      %1063 = vmatmul.bf16.gmra.mxu0 %v1050
      %v1064 = vpop.f32.mrf.mxu0
      %v1065 = vadd.f32 %v689, %v1064
      %v1066 = vpop.f32.mrf.mxu0
      %v1067 = vadd.f32 %v690, %v1066
      %1068 = vdwg.mxu0
      %v1069 = vsel %vm998, %v1065, -inf
      %1070 = vmax.xlane.f32.xlu0 %v1069
      %v1071 = vpop.xlane.xlu0 %1070
      %v1072 = vsel %vm998, %v1067, -inf
      %1073 = vmax.xlane.f32.xlu0 %v1072
      %v1074 = vpop.xlane.xlu0 %1073
      %v1075 = vsub.f32 %v1065, %v1071
      %v1076 = vsub.f32 %v1067, %v1074
      %v1077 = vmul.f32 %v1075, 1.442695
      %v1078 = vpow.pop %v1077
      %v1079 = vmul.f32 %v1076, 1.442695
      %v1080 = vpow.pop %v1079
      %v1081 = vsel %vm998, %v1078, 0.0
      %1082 = vadd.xlane.f32.xlu0 %v1081
      %v1083 = vpop.xlane.xlu0 %1082
      %v1084 = vsel %vm998, %v1080, 0.0
      %1085 = vadd.xlane.f32.xlu0 %v1084
      %v1086 = vpop.xlane.xlu0 %1085
      %v1087 = vrcp.pop %v1083
      %v1088 = vrcp.pop %v1086
      %v1089 = vmul.f32 %v1078, %v1087
      %v1090 = vmul.f32 %v1080, %v1088
      %v1091 = vpack.c.bf16 %v1090, %v1089
      %1092 = vrot.lane.b32.xlu0 %v1026, 96
      %v1093 = vpop.permute.xlu0 %1092
      %v1096 = vsel %vm998, %v1091, 0
      %1098 = vmatpush.bf16.msra.mxu0 0
      %1099 = vmatpush.bf16.msra.mxu0 0
      %1100 = vmatpush.bf16.msra.mxu0 0
      %1101 = vmatpush.bf16.msra.mxu0 0
      %1102 = vmatpush.bf16.msra.mxu0 0
      %1103 = vmatpush.bf16.msra.mxu0 0
      %1104 = vmatpush.bf16.msra.mxu0 0
      %1105 = vmatpush.bf16.msra.mxu0 %v1093
      %1106 = vmatmul.bf16.gmra.mxu0 %v1096
      %v1107 = vpop.f32.mrf.mxu0
      %v1108 = vadd.f32 0.0, %v1107
      %v1109 = vpop.f32.mrf.mxu0
      %v1110 = vadd.f32 0.0, %v1109
      %1111 = vdwg.mxu0
      %1112 = vrot.lane.b32.xlu0 %v971, 64
      %v1113 = vpop.permute.xlu0 %1112
      %1114 = vrot.lane.b32.xlu0 %v976, 64
      %v1115 = vpop.permute.xlu0 %1114
      %v1117 = vsel %vm977, %v1113, 0
      %v1120 = vsel %vm977, %v1115, 0
      %1122 = vmatpush.bf16.xpose.msra.mxu0 0
      %1123 = vmatpush.bf16.xpose.msra.mxu0 0
      %1124 = vmatpush.bf16.xpose.msra.mxu0 0
      %1125 = vmatpush.bf16.xpose.msra.mxu0 0
      %1126 = vmatpush.bf16.xpose.msra.mxu0 0
      %1127 = vmatpush.bf16.xpose.msra.mxu0 0
      %1128 = vmatpush.bf16.xpose.msra.mxu0 0
      %1129 = vmatpush.bf16.xpose.msra.mxu0 %v1120
      %1130 = vmatmul.bf16.gmra.mxu0 %v1117
      %v1131 = vpop.f32.mrf.mxu0
      %v1132 = vadd.f32 %v689, %v1131
      %v1133 = vpop.f32.mrf.mxu0
      %v1134 = vadd.f32 %v690, %v1133
      %1135 = vdwg.mxu0
      %v1136 = vsel %vm998, %v1132, -inf
      %1137 = vmax.xlane.f32.xlu0 %v1136
      %v1138 = vpop.xlane.xlu0 %1137
      %v1139 = vsel %vm998, %v1134, -inf
      %1140 = vmax.xlane.f32.xlu0 %v1139
      %v1141 = vpop.xlane.xlu0 %1140
      %v1142 = vsub.f32 %v1132, %v1138
      %v1143 = vsub.f32 %v1134, %v1141
      %v1144 = vmul.f32 %v1142, 1.442695
      %v1145 = vpow.pop %v1144
      %v1146 = vmul.f32 %v1143, 1.442695
      %v1147 = vpow.pop %v1146
      %v1148 = vsel %vm998, %v1145, 0.0
      %1149 = vadd.xlane.f32.xlu0 %v1148
      %v1150 = vpop.xlane.xlu0 %1149
      %v1151 = vsel %vm998, %v1147, 0.0
      %1152 = vadd.xlane.f32.xlu0 %v1151
      %v1153 = vpop.xlane.xlu0 %1152
      %v1154 = vrcp.pop %v1150
      %v1155 = vrcp.pop %v1153
      %v1156 = vmul.f32 %v1145, %v1154
      %v1157 = vmul.f32 %v1147, %v1155
      %v1158 = vpack.c.bf16 %v1157, %v1156
      %1159 = vrot.lane.b32.xlu0 %v1026, 64
      %v1160 = vpop.permute.xlu0 %1159
      %v1163 = vsel %vm998, %v1158, 0
      %1165 = vmatpush.bf16.msra.mxu0 0
      %1166 = vmatpush.bf16.msra.mxu0 0
      %1167 = vmatpush.bf16.msra.mxu0 0
      %1168 = vmatpush.bf16.msra.mxu0 0
      %1169 = vmatpush.bf16.msra.mxu0 0
      %1170 = vmatpush.bf16.msra.mxu0 0
      %1171 = vmatpush.bf16.msra.mxu0 0
      %1172 = vmatpush.bf16.msra.mxu0 %v1160
      %1173 = vmatmul.bf16.gmra.mxu0 %v1163
      %v1174 = vpop.f32.mrf.mxu0
      %v1175 = vadd.f32 0.0, %v1174
      %v1176 = vpop.f32.mrf.mxu0
      %v1177 = vadd.f32 0.0, %v1176
      %1178 = vdwg.mxu0
      %1179 = vrot.lane.b32.xlu0 %v971, 32
      %v1180 = vpop.permute.xlu0 %1179
      %1181 = vrot.lane.b32.xlu0 %v976, 32
      %v1182 = vpop.permute.xlu0 %1181
      %v1184 = vsel %vm977, %v1180, 0
      %v1187 = vsel %vm977, %v1182, 0
      %1189 = vmatpush.bf16.xpose.msra.mxu0 0
      %1190 = vmatpush.bf16.xpose.msra.mxu0 0
      %1191 = vmatpush.bf16.xpose.msra.mxu0 0
      %1192 = vmatpush.bf16.xpose.msra.mxu0 0
      %1193 = vmatpush.bf16.xpose.msra.mxu0 0
      %1194 = vmatpush.bf16.xpose.msra.mxu0 0
      %1195 = vmatpush.bf16.xpose.msra.mxu0 0
      %1196 = vmatpush.bf16.xpose.msra.mxu0 %v1187
      %1197 = vmatmul.bf16.gmra.mxu0 %v1184
      %v1198 = vpop.f32.mrf.mxu0
      %v1199 = vadd.f32 %v689, %v1198
      %v1200 = vpop.f32.mrf.mxu0
      %v1201 = vadd.f32 %v690, %v1200
      %1202 = vdwg.mxu0
      %v1203 = vsel %vm998, %v1199, -inf
      %1204 = vmax.xlane.f32.xlu0 %v1203
      %v1205 = vpop.xlane.xlu0 %1204
      %v1206 = vsel %vm998, %v1201, -inf
      %1207 = vmax.xlane.f32.xlu0 %v1206
      %v1208 = vpop.xlane.xlu0 %1207
      %v1209 = vsub.f32 %v1199, %v1205
      %v1210 = vsub.f32 %v1201, %v1208
      %v1211 = vmul.f32 %v1209, 1.442695
      %v1212 = vpow.pop %v1211
      %v1213 = vmul.f32 %v1210, 1.442695
      %v1214 = vpow.pop %v1213
      %v1215 = vsel %vm998, %v1212, 0.0
      %1216 = vadd.xlane.f32.xlu0 %v1215
      %v1217 = vpop.xlane.xlu0 %1216
      %v1218 = vsel %vm998, %v1214, 0.0
      %1219 = vadd.xlane.f32.xlu0 %v1218
      %v1220 = vpop.xlane.xlu0 %1219
      %v1221 = vrcp.pop %v1217
      %v1222 = vrcp.pop %v1220
      %v1223 = vmul.f32 %v1212, %v1221
      %v1224 = vmul.f32 %v1214, %v1222
      %v1225 = vpack.c.bf16 %v1224, %v1223
      %1226 = vrot.lane.b32.xlu0 %v1026, 32
      %v1227 = vpop.permute.xlu0 %1226
      %v1230 = vsel %vm998, %v1225, 0
      %1232 = vmatpush.bf16.msra.mxu0 0
      %1233 = vmatpush.bf16.msra.mxu0 0
      %1234 = vmatpush.bf16.msra.mxu0 0
      %1235 = vmatpush.bf16.msra.mxu0 0
      %1236 = vmatpush.bf16.msra.mxu0 0
      %1237 = vmatpush.bf16.msra.mxu0 0
      %1238 = vmatpush.bf16.msra.mxu0 0
      %1239 = vmatpush.bf16.msra.mxu0 %v1227
      %1240 = vmatmul.bf16.gmra.mxu0 %v1230
      %v1241 = vpop.f32.mrf.mxu0
      %v1242 = vadd.f32 0.0, %v1241
      %v1243 = vpop.f32.mrf.mxu0
      %v1244 = vadd.f32 0.0, %v1243
      %1245 = vdwg.mxu0
      %1248 = vrot.lane.b32.xlu0 %v1108, 32
      %v1249 = vpop.permute.xlu0 %1248
      %1250 = vrot.lane.b32.xlu0 %v1110, 32
      %v1251 = vpop.permute.xlu0 %1250
      %1256 = vrot.lane.b32.xlu0 %v1175, 64
      %v1257 = vpop.permute.xlu0 %1256
      %1258 = vrot.lane.b32.xlu0 %v1177, 64
      %v1259 = vpop.permute.xlu0 %1258
      %1264 = vrot.lane.b32.xlu0 %v1242, 96
      %v1265 = vpop.permute.xlu0 %1264
      %1266 = vrot.lane.b32.xlu0 %v1244, 96
      %v1267 = vpop.permute.xlu0 %1266
      %v1270 = vsel %vm977, %v1041, %v1249
      %v1271 = vsel %vm977, %v1043, %v1251
      %vm1272 = vcmask 523264
      %v1273 = vsel %vm1272, %v1270, %v1257
      %v1274 = vsel %vm1272, %v1271, %v1259
      %vm1275 = vcmask 785408
      %v1276 = vsel %vm1275, %v1273, %v1265
      %v1277 = vsel %vm1275, %v1274, %v1267
      %v1278 = vpack.c.bf16 %v1277, %v1276
      %v1279 = vld [vmem:[%s646] sm:$0xf]
      %v1280 = vld [vmem:[%s646 + $0x4] sm:$0xf]
      %v1281 = vld [vmem:[%s646 + $0x8] sm:$0xf]
      %v1282 = vld [vmem:[%s646 + $0xc] sm:$0xf]
      %v1283 = vld [vmem:[%s646 + $0x10] sm:$0xf]
      %v1284 = vld [vmem:[%s646 + $0x14] sm:$0xf]
      %v1285 = vld [vmem:[%s646 + $0x18] sm:$0xf]
      %v1286 = vld [vmem:[%s646 + $0x1c] sm:$0xf]
      %v1287 = vld [vmem:[%s646 + $0x20] sm:$0xf]
      %v1288 = vld [vmem:[%s646 + $0x24] sm:$0xf]
      %v1289 = vld [vmem:[%s646 + $0x28] sm:$0xf]
      %v1290 = vld [vmem:[%s646 + $0x2c] sm:$0xf]
      %v1291 = vld [vmem:[%s646 + $0x30] sm:$0xf]
      %v1292 = vld [vmem:[%s646 + $0x34] sm:$0xf]
      %v1293 = vld [vmem:[%s646 + $0x38] sm:$0xf]
      %v1294 = vld [vmem:[%s646 + $0x3c] sm:$0xf]
      %v1295 = vld [vmem:[%s649] sm:$0x1]
      %v1297 = vperm.slane %v1295, 0
      %v1315 = vunpack.c.l.b16 %v1279
      %v1316 = vunpack.c.l.b16 %v1280
      %v1317 = vunpack.c.l.b16 %v1281
      %v1318 = vunpack.c.l.b16 %v1282
      %v1319 = vunpack.c.l.b16 %v1283
      %v1320 = vunpack.c.l.b16 %v1284
      %v1321 = vunpack.c.l.b16 %v1285
      %v1322 = vunpack.c.l.b16 %v1286
      %v1323 = vunpack.c.l.b16 %v1287
      %v1324 = vunpack.c.l.b16 %v1288
      %v1325 = vunpack.c.l.b16 %v1289
      %v1326 = vunpack.c.l.b16 %v1290
      %v1327 = vunpack.c.l.b16 %v1291
      %v1328 = vunpack.c.l.b16 %v1292
      %v1329 = vunpack.c.l.b16 %v1293
      %v1330 = vunpack.c.l.b16 %v1294
      %v1331 = vpack.c.b16 %v1316, %v1315
      %v1332 = vpack.c.b16 %v1318, %v1317
      %v1333 = vpack.c.b16 %v1320, %v1319
      %v1334 = vpack.c.b16 %v1322, %v1321
      %v1335 = vpack.c.b16 %v1324, %v1323
      %v1336 = vpack.c.b16 %v1326, %v1325
      %v1337 = vpack.c.b16 %v1328, %v1327
      %v1338 = vpack.c.b16 %v1330, %v1329
      %1347 = vmatpush.bf16.msra.mxu0 %v1338
      %1348 = vmatpush.bf16.msra.mxu0 %v1337
      %1349 = vmatpush.bf16.msra.mxu0 %v1336
      %1350 = vmatpush.bf16.msra.mxu0 %v1335
      %1351 = vmatpush.bf16.msra.mxu0 %v1334
      %1352 = vmatpush.bf16.msra.mxu0 %v1333
      %1353 = vmatpush.bf16.msra.mxu0 %v1332
      %1354 = vmatpush.bf16.msra.mxu0 %v1331
      %1355 = vmatmul.bf16.gmra.mxu0 %v1278
      %v1356 = vpop.f32.mrf.mxu0
      %v1357 = vadd.f32 %v1297, %v1356
      %v1358 = vpop.f32.mrf.mxu0
      %v1359 = vadd.f32 %v1297, %v1358
      %1360 = vdwg.mxu0
      %v1361 = vadd.f32 %v687, %v1357
      %v1362 = vadd.f32 %v688, %v1359
      %v1363 = vld [vmem:[%s652] sm:$0x1]
      %v1364 = vld [vmem:[%s655] sm:$0x1]
      %1365 = vadd.xlane.f32.xlu0 %v1361
      %v1366 = vpop.xlane.xlu0 %1365
      %1367 = vadd.xlane.f32.xlu0 %v1362
      %v1368 = vpop.xlane.xlu0 %1367
      %v1369 = vmul.f32 %v1366, %v703
      %v1370 = vmul.f32 %v1368, %v703
      %v1371 = vsub.f32 %v1361, %v1369
      %v1372 = vsub.f32 %v1362, %v1370
      %v1373 = vmul.f32 %v1371, %v1371
      %v1374 = vmul.f32 %v1372, %v1372
      %1375 = vadd.xlane.f32.xlu0 %v1373
      %v1376 = vpop.xlane.xlu0 %1375
      %1377 = vadd.xlane.f32.xlu0 %v1374
      %v1378 = vpop.xlane.xlu0 %1377
      %v1379 = vmul.f32 %v1376, %v703
      %v1380 = vmul.f32 %v1378, %v703
      %v1381 = vadd.f32 %v1379, 1e-05
      %v1382 = vadd.f32 %v1380, 1e-05
      %v1383 = vrsqrt.pop %v1381
      %v1384 = vmul.f32 %v1383, %v1381
      %v1385 = vmul.f32 %v1384, %v1383
      %v1386 = vmul.f32 0.5, %v1385
      %v1387 = vsub.f32 1.5, %v1386
      %v1388 = vmul.f32 %v1383, %v1387
      %vm1389 = vweird.f32 %v1381
      %vm1390 = vweird.f32 %v1383
      %vm1391 = vmor %vm1389, %vm1390
      %v1392 = vsel %vm1391, %v1383, %v1388
      %v1393 = vrsqrt.pop %v1382
      %v1394 = vmul.f32 %v1393, %v1382
      %v1395 = vmul.f32 %v1394, %v1393
      %v1396 = vmul.f32 0.5, %v1395
      %v1397 = vsub.f32 1.5, %v1396
      %v1398 = vmul.f32 %v1393, %v1397
      %vm1399 = vweird.f32 %v1382
      %vm1400 = vweird.f32 %v1393
      %vm1401 = vmor %vm1399, %vm1400
      %v1402 = vsel %vm1401, %v1393, %v1398
      %v1403 = vmul.f32 %v1371, %v1392
      %v1404 = vmul.f32 %v1372, %v1402
      %v1406 = vperm.slane %v1363, 0
      %v1408 = vmul.f32 %v1403, %v1406
      %v1409 = vmul.f32 %v1404, %v1406
      %v1411 = vperm.slane %v1364, 0
      %v1413 = vadd.f32 %v1408, %v1411
      %v1414 = vadd.f32 %v1409, %v1411
      %v1415 = vpack.c.bf16 %v1414, %v1413
      %v1416 = vld [vmem:[%s660] sm:$0xff]
      %v1417 = vld [vmem:[%s660 + $0x8] sm:$0xff]
      %v1418 = vld [vmem:[%s660 + $0x10] sm:$0xff]
      %v1419 = vld [vmem:[%s660 + $0x18] sm:$0xff]
      %v1420 = vld [vmem:[%s660 + $0x20] sm:$0xff]
      %v1421 = vld [vmem:[%s660 + $0x28] sm:$0xff]
      %v1422 = vld [vmem:[%s660 + $0x30] sm:$0xff]
      %v1423 = vld [vmem:[%s660 + $0x38] sm:$0xff]
      %v1424 = vld [vmem:[%s660 + $0x40] sm:$0xff]
      %v1425 = vld [vmem:[%s660 + $0x48] sm:$0xff]
      %v1426 = vld [vmem:[%s660 + $0x50] sm:$0xff]
      %v1427 = vld [vmem:[%s660 + $0x58] sm:$0xff]
      %v1428 = vld [vmem:[%s660 + $0x60] sm:$0xff]
      %v1429 = vld [vmem:[%s660 + $0x68] sm:$0xff]
      %v1430 = vld [vmem:[%s660 + $0x70] sm:$0xff]
      %v1431 = vld [vmem:[%s660 + $0x78] sm:$0xff]
      %v1432 = vld [vmem:[%s660 + $0x80] sm:$0xff]
      %v1433 = vld [vmem:[%s660 + $0x88] sm:$0xff]
      %v1434 = vld [vmem:[%s660 + $0x90] sm:$0xff]
      %v1435 = vld [vmem:[%s660 + $0x98] sm:$0xff]
      %v1436 = vld [vmem:[%s660 + $0xa0] sm:$0xff]
      %v1437 = vld [vmem:[%s660 + $0xa8] sm:$0xff]
      %v1438 = vld [vmem:[%s660 + $0xb0] sm:$0xff]
      %v1439 = vld [vmem:[%s660 + $0xb8] sm:$0xff]
      %v1440 = vld [vmem:[%s660 + $0xc0] sm:$0xff]
      %v1441 = vld [vmem:[%s660 + $0xc8] sm:$0xff]
      %v1442 = vld [vmem:[%s660 + $0xd0] sm:$0xff]
      %v1443 = vld [vmem:[%s660 + $0xd8] sm:$0xff]
      %v1444 = vld [vmem:[%s660 + $0xe0] sm:$0xff]
      %v1445 = vld [vmem:[%s660 + $0xe8] sm:$0xff]
      %v1446 = vld [vmem:[%s660 + $0xf0] sm:$0xff]
      %v1447 = vld [vmem:[%s660 + $0xf8] sm:$0xff]
      %v1448 = vld [vmem:[%s664] sm:$0xf]
      %v1450 = vperm.slane %v1448, 0
      %v1451 = vperm.slane %v1448, 1
      %v1452 = vperm.slane %v1448, 2
      %v1453 = vperm.slane %v1448, 3
      %v1490 = vunpack.c.l.b16 %v1416
      %v1491 = vunpack.c.h.b16 %v1416
      %v1492 = vunpack.c.l.b16 %v1417
      %v1493 = vunpack.c.h.b16 %v1417
      %v1494 = vunpack.c.l.b16 %v1418
      %v1495 = vunpack.c.h.b16 %v1418
      %v1496 = vunpack.c.l.b16 %v1419
      %v1497 = vunpack.c.h.b16 %v1419
      %v1498 = vunpack.c.l.b16 %v1420
      %v1499 = vunpack.c.h.b16 %v1420
      %v1500 = vunpack.c.l.b16 %v1421
      %v1501 = vunpack.c.h.b16 %v1421
      %v1502 = vunpack.c.l.b16 %v1422
      %v1503 = vunpack.c.h.b16 %v1422
      %v1504 = vunpack.c.l.b16 %v1423
      %v1505 = vunpack.c.h.b16 %v1423
      %v1506 = vunpack.c.l.b16 %v1424
      %v1507 = vunpack.c.h.b16 %v1424
      %v1508 = vunpack.c.l.b16 %v1425
      %v1509 = vunpack.c.h.b16 %v1425
      %v1510 = vunpack.c.l.b16 %v1426
      %v1511 = vunpack.c.h.b16 %v1426
      %v1512 = vunpack.c.l.b16 %v1427
      %v1513 = vunpack.c.h.b16 %v1427
      %v1514 = vunpack.c.l.b16 %v1428
      %v1515 = vunpack.c.h.b16 %v1428
      %v1516 = vunpack.c.l.b16 %v1429
      %v1517 = vunpack.c.h.b16 %v1429
      %v1518 = vunpack.c.l.b16 %v1430
      %v1519 = vunpack.c.h.b16 %v1430
      %v1520 = vunpack.c.l.b16 %v1431
      %v1521 = vunpack.c.h.b16 %v1431
      %v1522 = vunpack.c.l.b16 %v1432
      %v1523 = vunpack.c.h.b16 %v1432
      %v1524 = vunpack.c.l.b16 %v1433
      %v1525 = vunpack.c.h.b16 %v1433
      %v1526 = vunpack.c.l.b16 %v1434
      %v1527 = vunpack.c.h.b16 %v1434
      %v1528 = vunpack.c.l.b16 %v1435
      %v1529 = vunpack.c.h.b16 %v1435
      %v1530 = vunpack.c.l.b16 %v1436
      %v1531 = vunpack.c.h.b16 %v1436
      %v1532 = vunpack.c.l.b16 %v1437
      %v1533 = vunpack.c.h.b16 %v1437
      %v1534 = vunpack.c.l.b16 %v1438
      %v1535 = vunpack.c.h.b16 %v1438
      %v1536 = vunpack.c.l.b16 %v1439
      %v1537 = vunpack.c.h.b16 %v1439
      %v1538 = vunpack.c.l.b16 %v1440
      %v1539 = vunpack.c.h.b16 %v1440
      %v1540 = vunpack.c.l.b16 %v1441
      %v1541 = vunpack.c.h.b16 %v1441
      %v1542 = vunpack.c.l.b16 %v1442
      %v1543 = vunpack.c.h.b16 %v1442
      %v1544 = vunpack.c.l.b16 %v1443
      %v1545 = vunpack.c.h.b16 %v1443
      %v1546 = vunpack.c.l.b16 %v1444
      %v1547 = vunpack.c.h.b16 %v1444
      %v1548 = vunpack.c.l.b16 %v1445
      %v1549 = vunpack.c.h.b16 %v1445
      %v1550 = vunpack.c.l.b16 %v1446
      %v1551 = vunpack.c.h.b16 %v1446
      %v1552 = vunpack.c.l.b16 %v1447
      %v1553 = vunpack.c.h.b16 %v1447
      %v1554 = vpack.c.b16 %v1494, %v1490
      %v1555 = vpack.c.b16 %v1495, %v1491
      %v1556 = vpack.c.b16 %v1496, %v1492
      %v1557 = vpack.c.b16 %v1497, %v1493
      %v1558 = vpack.c.b16 %v1502, %v1498
      %v1559 = vpack.c.b16 %v1503, %v1499
      %v1560 = vpack.c.b16 %v1504, %v1500
      %v1561 = vpack.c.b16 %v1505, %v1501
      %v1562 = vpack.c.b16 %v1510, %v1506
      %v1563 = vpack.c.b16 %v1511, %v1507
      %v1564 = vpack.c.b16 %v1512, %v1508
      %v1565 = vpack.c.b16 %v1513, %v1509
      %v1566 = vpack.c.b16 %v1518, %v1514
      %v1567 = vpack.c.b16 %v1519, %v1515
      %v1568 = vpack.c.b16 %v1520, %v1516
      %v1569 = vpack.c.b16 %v1521, %v1517
      %v1570 = vpack.c.b16 %v1526, %v1522
      %v1571 = vpack.c.b16 %v1527, %v1523
      %v1572 = vpack.c.b16 %v1528, %v1524
      %v1573 = vpack.c.b16 %v1529, %v1525
      %v1574 = vpack.c.b16 %v1534, %v1530
      %v1575 = vpack.c.b16 %v1535, %v1531
      %v1576 = vpack.c.b16 %v1536, %v1532
      %v1577 = vpack.c.b16 %v1537, %v1533
      %v1578 = vpack.c.b16 %v1542, %v1538
      %v1579 = vpack.c.b16 %v1543, %v1539
      %v1580 = vpack.c.b16 %v1544, %v1540
      %v1581 = vpack.c.b16 %v1545, %v1541
      %v1582 = vpack.c.b16 %v1550, %v1546
      %v1583 = vpack.c.b16 %v1551, %v1547
      %v1584 = vpack.c.b16 %v1552, %v1548
      %v1585 = vpack.c.b16 %v1553, %v1549
      %1618 = vmatpush.bf16.msra.mxu0 %v1582
      %1619 = vmatpush.bf16.msra.mxu0 %v1578
      %1620 = vmatpush.bf16.msra.mxu0 %v1574
      %1621 = vmatpush.bf16.msra.mxu0 %v1570
      %1622 = vmatpush.bf16.msra.mxu0 %v1566
      %1623 = vmatpush.bf16.msra.mxu0 %v1562
      %1624 = vmatpush.bf16.msra.mxu0 %v1558
      %1625 = vmatpush.bf16.msra.mxu0 %v1554
      %1626 = vmatmul.bf16.gmra.mxu0 %v1415
      %v1627 = vpop.f32.mrf.mxu0
      %v1628 = vadd.f32 %v1450, %v1627
      %v1629 = vpop.f32.mrf.mxu0
      %v1630 = vadd.f32 %v1450, %v1629
      %1631 = vdwg.mxu0
      %1632 = vmatpush.bf16.msra.mxu0 %v1583
      %1633 = vmatpush.bf16.msra.mxu0 %v1579
      %1634 = vmatpush.bf16.msra.mxu0 %v1575
      %1635 = vmatpush.bf16.msra.mxu0 %v1571
      %1636 = vmatpush.bf16.msra.mxu0 %v1567
      %1637 = vmatpush.bf16.msra.mxu0 %v1563
      %1638 = vmatpush.bf16.msra.mxu0 %v1559
      %1639 = vmatpush.bf16.msra.mxu0 %v1555
      %1640 = vmatmul.bf16.gmra.mxu0 %v1415
      %v1641 = vpop.f32.mrf.mxu0
      %v1642 = vadd.f32 %v1451, %v1641
      %v1643 = vpop.f32.mrf.mxu0
      %v1644 = vadd.f32 %v1451, %v1643
      %1645 = vdwg.mxu0
      %1646 = vmatpush.bf16.msra.mxu0 %v1584
      %1647 = vmatpush.bf16.msra.mxu0 %v1580
      %1648 = vmatpush.bf16.msra.mxu0 %v1576
      %1649 = vmatpush.bf16.msra.mxu0 %v1572
      %1650 = vmatpush.bf16.msra.mxu0 %v1568
      %1651 = vmatpush.bf16.msra.mxu0 %v1564
      %1652 = vmatpush.bf16.msra.mxu0 %v1560
      %1653 = vmatpush.bf16.msra.mxu0 %v1556
      %1654 = vmatmul.bf16.gmra.mxu0 %v1415
      %v1655 = vpop.f32.mrf.mxu0
      %v1656 = vadd.f32 %v1452, %v1655
      %v1657 = vpop.f32.mrf.mxu0
      %v1658 = vadd.f32 %v1452, %v1657
      %1659 = vdwg.mxu0
      %1660 = vmatpush.bf16.msra.mxu0 %v1585
      %1661 = vmatpush.bf16.msra.mxu0 %v1581
      %1662 = vmatpush.bf16.msra.mxu0 %v1577
      %1663 = vmatpush.bf16.msra.mxu0 %v1573
      %1664 = vmatpush.bf16.msra.mxu0 %v1569
      %1665 = vmatpush.bf16.msra.mxu0 %v1565
      %1666 = vmatpush.bf16.msra.mxu0 %v1561
      %1667 = vmatpush.bf16.msra.mxu0 %v1557
      %1668 = vmatmul.bf16.gmra.mxu0 %v1415
      %v1669 = vpop.f32.mrf.mxu0
      %v1670 = vadd.f32 %v1453, %v1669
      %v1671 = vpop.f32.mrf.mxu0
      %v1672 = vadd.f32 %v1453, %v1671
      %1673 = vdwg.mxu0
      %v1674 = vmul.f32 %v1628, 0.5
      %v1675 = vmul.f32 %v1642, 0.5
      %v1676 = vmul.f32 %v1656, 0.5
      %v1677 = vmul.f32 %v1670, 0.5
      %v1678 = vmul.f32 %v1630, 0.5
      %v1679 = vmul.f32 %v1644, 0.5
      %v1680 = vmul.f32 %v1658, 0.5
      %v1681 = vmul.f32 %v1672, 0.5
      %v1682 = vmul.f32 %v1628, %v1628
      %v1683 = vmul.f32 %v1642, %v1642
      %v1684 = vmul.f32 %v1656, %v1656
      %v1685 = vmul.f32 %v1670, %v1670
      %v1686 = vmul.f32 %v1630, %v1630
      %v1687 = vmul.f32 %v1644, %v1644
      %v1688 = vmul.f32 %v1658, %v1658
      %v1689 = vmul.f32 %v1672, %v1672
      %v1690 = vmul.f32 %v1628, %v1682
      %v1691 = vmul.f32 %v1642, %v1683
      %v1692 = vmul.f32 %v1656, %v1684
      %v1693 = vmul.f32 %v1670, %v1685
      %v1694 = vmul.f32 %v1630, %v1686
      %v1695 = vmul.f32 %v1644, %v1687
      %v1696 = vmul.f32 %v1658, %v1688
      %v1697 = vmul.f32 %v1672, %v1689
      %v1698 = vmul.f32 %v1690, 0.044715
      %v1699 = vmul.f32 %v1691, 0.044715
      %v1700 = vmul.f32 %v1692, 0.044715
      %v1701 = vmul.f32 %v1693, 0.044715
      %v1702 = vmul.f32 %v1694, 0.044715
      %v1703 = vmul.f32 %v1695, 0.044715
      %v1704 = vmul.f32 %v1696, 0.044715
      %v1705 = vmul.f32 %v1697, 0.044715
      %v1706 = vadd.f32 %v1628, %v1698
      %v1707 = vadd.f32 %v1642, %v1699
      %v1708 = vadd.f32 %v1656, %v1700
      %v1709 = vadd.f32 %v1670, %v1701
      %v1710 = vadd.f32 %v1630, %v1702
      %v1711 = vadd.f32 %v1644, %v1703
      %v1712 = vadd.f32 %v1658, %v1704
      %v1713 = vadd.f32 %v1672, %v1705
      %v1714 = vmul.f32 %v1706, 0.7978846
      %v1715 = vmul.f32 %v1707, 0.7978846
      %v1716 = vmul.f32 %v1708, 0.7978846
      %v1717 = vmul.f32 %v1709, 0.7978846
      %v1718 = vmul.f32 %v1710, 0.7978846
      %v1719 = vmul.f32 %v1711, 0.7978846
      %v1720 = vmul.f32 %v1712, 0.7978846
      %v1721 = vmul.f32 %v1713, 0.7978846
      %v1722 = vtanh.pop %v1714
      %v1723 = vtanh.pop %v1715
      %v1724 = vtanh.pop %v1716
      %v1725 = vtanh.pop %v1717
      %v1726 = vtanh.pop %v1718
      %v1727 = vtanh.pop %v1719
      %v1728 = vtanh.pop %v1720
      %v1729 = vtanh.pop %v1721
      %v1730 = vadd.f32 %v1722, 1.0
      %v1731 = vadd.f32 %v1723, 1.0
      %v1732 = vadd.f32 %v1724, 1.0
      %v1733 = vadd.f32 %v1725, 1.0
      %v1734 = vadd.f32 %v1726, 1.0
      %v1735 = vadd.f32 %v1727, 1.0
      %v1736 = vadd.f32 %v1728, 1.0
      %v1737 = vadd.f32 %v1729, 1.0
      %v1738 = vmul.f32 %v1674, %v1730
      %v1739 = vmul.f32 %v1675, %v1731
      %v1740 = vmul.f32 %v1676, %v1732
      %v1741 = vmul.f32 %v1677, %v1733
      %v1742 = vmul.f32 %v1678, %v1734
      %v1743 = vmul.f32 %v1679, %v1735
      %v1744 = vmul.f32 %v1680, %v1736
      %v1745 = vmul.f32 %v1681, %v1737
      %v1746 = vpack.c.bf16 %v1742, %v1738
      %v1747 = vpack.c.bf16 %v1743, %v1739
      %v1748 = vpack.c.bf16 %v1744, %v1740
      %v1749 = vpack.c.bf16 %v1745, %v1741
      %v1750 = vld [vmem:[%s669] sm:$0xf]
      %v1751 = vld [vmem:[%s669 + $0x4] sm:$0xf]
      %v1752 = vld [vmem:[%s669 + $0x8] sm:$0xf]
      %v1753 = vld [vmem:[%s669 + $0xc] sm:$0xf]
      %v1754 = vld [vmem:[%s669 + $0x10] sm:$0xf]
      %v1755 = vld [vmem:[%s669 + $0x14] sm:$0xf]
      %v1756 = vld [vmem:[%s669 + $0x18] sm:$0xf]
      %v1757 = vld [vmem:[%s669 + $0x1c] sm:$0xf]
      %v1758 = vld [vmem:[%s669 + $0x20] sm:$0xf]
      %v1759 = vld [vmem:[%s669 + $0x24] sm:$0xf]
      %v1760 = vld [vmem:[%s669 + $0x28] sm:$0xf]
      %v1761 = vld [vmem:[%s669 + $0x2c] sm:$0xf]
      %v1762 = vld [vmem:[%s669 + $0x30] sm:$0xf]
      %v1763 = vld [vmem:[%s669 + $0x34] sm:$0xf]
      %v1764 = vld [vmem:[%s669 + $0x38] sm:$0xf]
      %v1765 = vld [vmem:[%s669 + $0x3c] sm:$0xf]
      %v1766 = vld [vmem:[%s669 + $0x40] sm:$0xf]
      %v1767 = vld [vmem:[%s669 + $0x44] sm:$0xf]
      %v1768 = vld [vmem:[%s669 + $0x48] sm:$0xf]
      %v1769 = vld [vmem:[%s669 + $0x4c] sm:$0xf]
      %v1770 = vld [vmem:[%s669 + $0x50] sm:$0xf]
      %v1771 = vld [vmem:[%s669 + $0x54] sm:$0xf]
      %v1772 = vld [vmem:[%s669 + $0x58] sm:$0xf]
      %v1773 = vld [vmem:[%s669 + $0x5c] sm:$0xf]
      %v1774 = vld [vmem:[%s669 + $0x60] sm:$0xf]
      %v1775 = vld [vmem:[%s669 + $0x64] sm:$0xf]
      %v1776 = vld [vmem:[%s669 + $0x68] sm:$0xf]
      %v1777 = vld [vmem:[%s669 + $0x6c] sm:$0xf]
      %v1778 = vld [vmem:[%s669 + $0x70] sm:$0xf]
      %v1779 = vld [vmem:[%s669 + $0x74] sm:$0xf]
      %v1780 = vld [vmem:[%s669 + $0x78] sm:$0xf]
      %v1781 = vld [vmem:[%s669 + $0x7c] sm:$0xf]
      %v1782 = vld [vmem:[%s669 + $0x80] sm:$0xf]
      %v1783 = vld [vmem:[%s669 + $0x84] sm:$0xf]
      %v1784 = vld [vmem:[%s669 + $0x88] sm:$0xf]
      %v1785 = vld [vmem:[%s669 + $0x8c] sm:$0xf]
      %v1786 = vld [vmem:[%s669 + $0x90] sm:$0xf]
      %v1787 = vld [vmem:[%s669 + $0x94] sm:$0xf]
      %v1788 = vld [vmem:[%s669 + $0x98] sm:$0xf]
      %v1789 = vld [vmem:[%s669 + $0x9c] sm:$0xf]
      %v1790 = vld [vmem:[%s669 + $0xa0] sm:$0xf]
      %v1791 = vld [vmem:[%s669 + $0xa4] sm:$0xf]
      %v1792 = vld [vmem:[%s669 + $0xa8] sm:$0xf]
      %v1793 = vld [vmem:[%s669 + $0xac] sm:$0xf]
      %v1794 = vld [vmem:[%s669 + $0xb0] sm:$0xf]
      %v1795 = vld [vmem:[%s669 + $0xb4] sm:$0xf]
      %v1796 = vld [vmem:[%s669 + $0xb8] sm:$0xf]
      %v1797 = vld [vmem:[%s669 + $0xbc] sm:$0xf]
      %v1798 = vld [vmem:[%s669 + $0xc0] sm:$0xf]
      %v1799 = vld [vmem:[%s669 + $0xc4] sm:$0xf]
      %v1800 = vld [vmem:[%s669 + $0xc8] sm:$0xf]
      %v1801 = vld [vmem:[%s669 + $0xcc] sm:$0xf]
      %v1802 = vld [vmem:[%s669 + $0xd0] sm:$0xf]
      %v1803 = vld [vmem:[%s669 + $0xd4] sm:$0xf]
      %v1804 = vld [vmem:[%s669 + $0xd8] sm:$0xf]
      %v1805 = vld [vmem:[%s669 + $0xdc] sm:$0xf]
      %v1806 = vld [vmem:[%s669 + $0xe0] sm:$0xf]
      %v1807 = vld [vmem:[%s669 + $0xe4] sm:$0xf]
      %v1808 = vld [vmem:[%s669 + $0xe8] sm:$0xf]
      %v1809 = vld [vmem:[%s669 + $0xec] sm:$0xf]
      %v1810 = vld [vmem:[%s669 + $0xf0] sm:$0xf]
      %v1811 = vld [vmem:[%s669 + $0xf4] sm:$0xf]
      %v1812 = vld [vmem:[%s669 + $0xf8] sm:$0xf]
      %v1813 = vld [vmem:[%s669 + $0xfc] sm:$0xf]
      %v1814 = vld [vmem:[%s672] sm:$0x1]
      %v1816 = vperm.slane %v1814, 0
      %v1882 = vunpack.c.l.b16 %v1750
      %v1883 = vunpack.c.l.b16 %v1751
      %v1884 = vunpack.c.l.b16 %v1752
      %v1885 = vunpack.c.l.b16 %v1753
      %v1886 = vunpack.c.l.b16 %v1754
      %v1887 = vunpack.c.l.b16 %v1755
      %v1888 = vunpack.c.l.b16 %v1756
      %v1889 = vunpack.c.l.b16 %v1757
      %v1890 = vunpack.c.l.b16 %v1758
      %v1891 = vunpack.c.l.b16 %v1759
      %v1892 = vunpack.c.l.b16 %v1760
      %v1893 = vunpack.c.l.b16 %v1761
      %v1894 = vunpack.c.l.b16 %v1762
      %v1895 = vunpack.c.l.b16 %v1763
      %v1896 = vunpack.c.l.b16 %v1764
      %v1897 = vunpack.c.l.b16 %v1765
      %v1898 = vunpack.c.l.b16 %v1766
      %v1899 = vunpack.c.l.b16 %v1767
      %v1900 = vunpack.c.l.b16 %v1768
      %v1901 = vunpack.c.l.b16 %v1769
      %v1902 = vunpack.c.l.b16 %v1770
      %v1903 = vunpack.c.l.b16 %v1771
      %v1904 = vunpack.c.l.b16 %v1772
      %v1905 = vunpack.c.l.b16 %v1773
      %v1906 = vunpack.c.l.b16 %v1774
      %v1907 = vunpack.c.l.b16 %v1775
      %v1908 = vunpack.c.l.b16 %v1776
      %v1909 = vunpack.c.l.b16 %v1777
      %v1910 = vunpack.c.l.b16 %v1778
      %v1911 = vunpack.c.l.b16 %v1779
      %v1912 = vunpack.c.l.b16 %v1780
      %v1913 = vunpack.c.l.b16 %v1781
      %v1914 = vunpack.c.l.b16 %v1782
      %v1915 = vunpack.c.l.b16 %v1783
      %v1916 = vunpack.c.l.b16 %v1784
      %v1917 = vunpack.c.l.b16 %v1785
      %v1918 = vunpack.c.l.b16 %v1786
      %v1919 = vunpack.c.l.b16 %v1787
      %v1920 = vunpack.c.l.b16 %v1788
      %v1921 = vunpack.c.l.b16 %v1789
      %v1922 = vunpack.c.l.b16 %v1790
      %v1923 = vunpack.c.l.b16 %v1791
      %v1924 = vunpack.c.l.b16 %v1792
      %v1925 = vunpack.c.l.b16 %v1793
      %v1926 = vunpack.c.l.b16 %v1794
      %v1927 = vunpack.c.l.b16 %v1795
      %v1928 = vunpack.c.l.b16 %v1796
      %v1929 = vunpack.c.l.b16 %v1797
      %v1930 = vunpack.c.l.b16 %v1798
      %v1931 = vunpack.c.l.b16 %v1799
      %v1932 = vunpack.c.l.b16 %v1800
      %v1933 = vunpack.c.l.b16 %v1801
      %v1934 = vunpack.c.l.b16 %v1802
      %v1935 = vunpack.c.l.b16 %v1803
      %v1936 = vunpack.c.l.b16 %v1804
      %v1937 = vunpack.c.l.b16 %v1805
      %v1938 = vunpack.c.l.b16 %v1806
      %v1939 = vunpack.c.l.b16 %v1807
      %v1940 = vunpack.c.l.b16 %v1808
      %v1941 = vunpack.c.l.b16 %v1809
      %v1942 = vunpack.c.l.b16 %v1810
      %v1943 = vunpack.c.l.b16 %v1811
      %v1944 = vunpack.c.l.b16 %v1812
      %v1945 = vunpack.c.l.b16 %v1813
      %v1946 = vpack.c.b16 %v1883, %v1882
      %v1947 = vpack.c.b16 %v1885, %v1884
      %v1948 = vpack.c.b16 %v1887, %v1886
      %v1949 = vpack.c.b16 %v1889, %v1888
      %v1950 = vpack.c.b16 %v1891, %v1890
      %v1951 = vpack.c.b16 %v1893, %v1892
      %v1952 = vpack.c.b16 %v1895, %v1894
      %v1953 = vpack.c.b16 %v1897, %v1896
      %v1954 = vpack.c.b16 %v1899, %v1898
      %v1955 = vpack.c.b16 %v1901, %v1900
      %v1956 = vpack.c.b16 %v1903, %v1902
      %v1957 = vpack.c.b16 %v1905, %v1904
      %v1958 = vpack.c.b16 %v1907, %v1906
      %v1959 = vpack.c.b16 %v1909, %v1908
      %v1960 = vpack.c.b16 %v1911, %v1910
      %v1961 = vpack.c.b16 %v1913, %v1912
      %v1962 = vpack.c.b16 %v1915, %v1914
      %v1963 = vpack.c.b16 %v1917, %v1916
      %v1964 = vpack.c.b16 %v1919, %v1918
      %v1965 = vpack.c.b16 %v1921, %v1920
      %v1966 = vpack.c.b16 %v1923, %v1922
      %v1967 = vpack.c.b16 %v1925, %v1924
      %v1968 = vpack.c.b16 %v1927, %v1926
      %v1969 = vpack.c.b16 %v1929, %v1928
      %v1970 = vpack.c.b16 %v1931, %v1930
      %v1971 = vpack.c.b16 %v1933, %v1932
      %v1972 = vpack.c.b16 %v1935, %v1934
      %v1973 = vpack.c.b16 %v1937, %v1936
      %v1974 = vpack.c.b16 %v1939, %v1938
      %v1975 = vpack.c.b16 %v1941, %v1940
      %v1976 = vpack.c.b16 %v1943, %v1942
      %v1977 = vpack.c.b16 %v1945, %v1944
      %2010 = vmatpush.bf16.msra.mxu0 %v1953
      %2011 = vmatpush.bf16.msra.mxu0 %v1952
      %2012 = vmatpush.bf16.msra.mxu0 %v1951
      %2013 = vmatpush.bf16.msra.mxu0 %v1950
      %2014 = vmatpush.bf16.msra.mxu0 %v1949
      %2015 = vmatpush.bf16.msra.mxu0 %v1948
      %2016 = vmatpush.bf16.msra.mxu0 %v1947
      %2017 = vmatpush.bf16.msra.mxu0 %v1946
      %2018 = vmatmul.bf16.gmra.mxu0 %v1746
      %v2019 = vpop.f32.mrf.mxu0
      %v2020 = vadd.f32 %v1816, %v2019
      %v2021 = vpop.f32.mrf.mxu0
      %v2022 = vadd.f32 %v1816, %v2021
      %2023 = vdwg.mxu0
      %2024 = vmatpush.bf16.msra.mxu0 %v1961
      %2025 = vmatpush.bf16.msra.mxu0 %v1960
      %2026 = vmatpush.bf16.msra.mxu0 %v1959
      %2027 = vmatpush.bf16.msra.mxu0 %v1958
      %2028 = vmatpush.bf16.msra.mxu0 %v1957
      %2029 = vmatpush.bf16.msra.mxu0 %v1956
      %2030 = vmatpush.bf16.msra.mxu0 %v1955
      %2031 = vmatpush.bf16.msra.mxu0 %v1954
      %2032 = vmatmul.bf16.gmra.mxu0 %v1747
      %v2033 = vpop.f32.mrf.mxu0
      %v2034 = vadd.f32 %v2020, %v2033
      %v2035 = vpop.f32.mrf.mxu0
      %v2036 = vadd.f32 %v2022, %v2035
      %2037 = vdwg.mxu0
      %2038 = vmatpush.bf16.msra.mxu0 %v1969
      %2039 = vmatpush.bf16.msra.mxu0 %v1968
      %2040 = vmatpush.bf16.msra.mxu0 %v1967
      %2041 = vmatpush.bf16.msra.mxu0 %v1966
      %2042 = vmatpush.bf16.msra.mxu0 %v1965
      %2043 = vmatpush.bf16.msra.mxu0 %v1964
      %2044 = vmatpush.bf16.msra.mxu0 %v1963
      %2045 = vmatpush.bf16.msra.mxu0 %v1962
      %2046 = vmatmul.bf16.gmra.mxu0 %v1748
      %v2047 = vpop.f32.mrf.mxu0
      %v2048 = vadd.f32 %v2034, %v2047
      %v2049 = vpop.f32.mrf.mxu0
      %v2050 = vadd.f32 %v2036, %v2049
      %2051 = vdwg.mxu0
      %2052 = vmatpush.bf16.msra.mxu0 %v1977
      %2053 = vmatpush.bf16.msra.mxu0 %v1976
      %2054 = vmatpush.bf16.msra.mxu0 %v1975
      %2055 = vmatpush.bf16.msra.mxu0 %v1974
      %2056 = vmatpush.bf16.msra.mxu0 %v1973
      %2057 = vmatpush.bf16.msra.mxu0 %v1972
      %2058 = vmatpush.bf16.msra.mxu0 %v1971
      %2059 = vmatpush.bf16.msra.mxu0 %v1970
      %2060 = vmatmul.bf16.gmra.mxu0 %v1749
      %v2061 = vpop.f32.mrf.mxu0
      %v2062 = vadd.f32 %v2048, %v2061
      %v2063 = vpop.f32.mrf.mxu0
      %v2064 = vadd.f32 %v2050, %v2063
      %2065 = vdwg.mxu0
      %v2066 = vadd.f32 %v1361, %v2062
      %v2067 = vadd.f32 %v1362, %v2064
      %2068 = vst [vmem:[%s677] sm:$0xff] %v2066
      %2069 = vst [vmem:[%s677 + $0x8] sm:$0xff] %v2067
      %p2070 = scmp.lt.s32.totalorder %s29, 0
      %s2071 = scalar_select %p2070, %s29, 0
      %s2072 = smul.addr %s2071, 2
      %s2073 = smul.addr %s2072, 8
      %s2074 = scalar_lea.vmem %s14, %s2073
      // Predicated region
      $region81: #{gpt2_model.2} parent=75 // pred_check
        %p2075 = pneg %p414
      $region82: #{gpt2_model.2} parent=75 // pred_check_branch
        %2077 = sbr.rel (%p2075) target = $region84
      $region83: #{gpt2_model.2} parent=75 // pred_region
        _
      $region84: #{gpt2_model.2} parent=75 // pred_fallthru
        _
      // Predicated region
      $region85: #{gpt2_model.2} parent=75 // pred_check
        %p2078 = pneg %p414
      $region86: #{gpt2_model.2} parent=75 // pred_check_branch
        %2080 = sbr.rel (%p2078) target = $region88
      $region87: #{gpt2_model.2} parent=75 // pred_region
        %p2081 = scmp.lt.s32.totalorder %s29, 0
        %s2082 = scalar_select %p2081, %s29, 0
        %s2083 = smul.addr %s2082, 2
        %s2084 = smul.addr %s2083, 8
        %s2085 = scalar_lea.vmem %s14, %s2084
      $region88: #{gpt2_model.2} parent=75 // pred_fallthru
        _
    $region76: #{gpt2_model.2} parent=5 // pred_fallthru
      _
    %p2086 = scmp.le.s32.totalorder 2, %s20
    // Predicated region
    $region89: #{gpt2_model.2} parent=5 // pred_check
      %p2087 = pneg %p2086
    $region90: #{gpt2_model.2} parent=5 // pred_check_branch
      %2089 = sbr.rel (%p2087) target = $region92
    $region91: #{gpt2_model.2} parent=5 // pred_region
      %s2090 = ssub.s32 %s20, 2
    $region92: #{gpt2_model.2} parent=5 // pred_fallthru
      _
  $region6: #{gpt2_model.2} parent=0 // loop_footer
    %s24 = sadd.s32 1, %s20
  $region7: #{gpt2_model.2} parent=0 // loop_footer_branch
    %19 = sbr.rel target = $region3
  $region8: #{gpt2_model.2} parent=0 // loop_exit
    _

</llo_original>
